<compile_context>
chip_gen: v7x
topology: tpu7x:2x2x1
jax: 0.10.0
libtpu: 0.0.40
codegen_flags: <defaults>
</compile_context>

<pallas_src>
import functools

import jax
import jax.numpy as jnp
from jax.experimental import pallas as pl
from jax.experimental.pallas import tpu as pltpu

K_IN = 28 * 28      # 784
K_PAD = 896         # 7 * 128, lane-aligned contraction dim
HIDDEN = 512
N_OUT = 10
N_PAD = 128         # lane-dense output width


def mlp_kernel(x_ref, w1_ref, b1_ref, w2_ref, b2_ref, o_ref):
    # x_ref : (TILE_B, K_PAD)   bf16      w1_ref: (K_PAD, HIDDEN) bf16
    # b1_ref: (1, HIDDEN)       f32       w2_ref: (HIDDEN, N_PAD) bf16
    # b2_ref: (1, N_PAD)        f32       o_ref : (TILE_B, N_PAD) f32
    h = jnp.dot(x_ref[...], w1_ref[...], preferred_element_type=jnp.float32)
    h = jnp.maximum(h + b1_ref[...], 0.0)                    # bias + ReLU in f32 (VPU)
    out = jnp.dot(h.astype(jnp.bfloat16), w2_ref[...],
                  preferred_element_type=jnp.float32)
    o_ref[...] = out + b2_ref[...]


def _round_up(x, m):
    return (x + m - 1) // m * m


@functools.partial(jax.jit, static_argnames=("tile_b",))
def simple_nn_forward(x_nchw, w1, b1, w2, b2, *, tile_b=256):
    """x_nchw: (B, 1, 28, 28) float32. Returns logits (B, 10) float32."""
    B = x_nchw.shape[0]
    x = x_nchw.reshape(B, K_IN).astype(jnp.float32)           # torch .view(-1, 784)

    # Wrapper-side padding / casting (weights could be pre-padded once if reused).
    b_pad8 = _round_up(max(B, 8), 8)                          # >= 8 sublane rows
    TILE_B = tile_b if b_pad8 >= tile_b else b_pad8
    B_pad = _round_up(b_pad8, TILE_B)
    nb = B_pad // TILE_B

    x_p = jnp.zeros((B_pad, K_PAD), jnp.bfloat16).at[:B, :K_IN].set(
        x.astype(jnp.bfloat16))
    w1_p = jnp.zeros((K_PAD, HIDDEN), jnp.bfloat16).at[:K_IN, :].set(
        w1.astype(jnp.bfloat16))
    b1_p = b1.reshape(1, HIDDEN).astype(jnp.float32)
    w2_p = jnp.zeros((HIDDEN, N_PAD), jnp.bfloat16).at[:, :N_OUT].set(
        w2.astype(jnp.bfloat16))
    b2_p = jnp.zeros((1, N_PAD), jnp.float32).at[:, :N_OUT].set(
        b2.reshape(1, N_OUT).astype(jnp.float32))

    out_pad = pl.pallas_call(
        mlp_kernel,
        out_shape=jax.ShapeDtypeStruct((B_pad, N_PAD), jnp.float32),
        grid_spec=pltpu.PrefetchScalarGridSpec(
            num_scalar_prefetch=0,
            grid=(nb,),
            in_specs=[
                pl.BlockSpec((TILE_B, K_PAD), lambda i: (i, 0)),   # streamed per tile
                pl.BlockSpec((K_PAD, HIDDEN), lambda i: (0, 0)),   # weights resident
                pl.BlockSpec((1, HIDDEN), lambda i: (0, 0)),
                pl.BlockSpec((HIDDEN, N_PAD), lambda i: (0, 0)),
                pl.BlockSpec((1, N_PAD), lambda i: (0, 0)),
            ],
            out_specs=pl.BlockSpec((TILE_B, N_PAD), lambda i: (i, 0)),
        ),
        compiler_params=pltpu.CompilerParams(
            dimension_semantics=("parallel",)),                    # v7x: shard tiles over 2 TCs
    )(x_p, w1_p, b1_p, w2_p, b2_p)

    return out_pad[:B, :N_OUT]


def init_params(key):
    """Deterministic init matching nn.Linear shapes (uniform +-1/sqrt(fan_in))."""
    k1, k2, k3, k4 = jax.random.split(key, 4)
    lim1 = 1.0 / (28 * 28) ** 0.5
    lim2 = 1.0 / 512 ** 0.5
    w1 = jax.random.uniform(k1, (28 * 28, 512), jnp.float32, -lim1, lim1)
    b1 = jax.random.uniform(k2, (512,), jnp.float32, -lim1, lim1)
    w2 = jax.random.uniform(k3, (512, 10), jnp.float32, -lim2, lim2)
    b2 = jax.random.uniform(k4, (10,), jnp.float32, -lim2, lim2)
    return w1, b1, w2, b2


if __name__ == "__main__":
    key = jax.random.PRNGKey(0)
    kx, kp = jax.random.split(key)

    B = 2
    x = jax.random.normal(kx, (B, 1, 28, 28), jnp.float32)    # NCHW, MNIST-like
    w1, b1, w2, b2 = init_params(kp)

    out = simple_nn_forward(x, w1, b1, w2, b2)
    jax.block_until_ready(out)
    assert out.shape == (B, 10)

    xf = x.reshape(B, -1)
    # Reference mirroring the kernel's precision (bf16 operands, f32 accumulate).
    h_ref = jnp.maximum(
        jnp.dot(xf.astype(jnp.bfloat16), w1.astype(jnp.bfloat16),
                preferred_element_type=jnp.float32) + b1, 0.0)
    ref_bf16 = jnp.dot(h_ref.astype(jnp.bfloat16), w2.astype(jnp.bfloat16),
                       preferred_element_type=jnp.float32) + b2
    assert jnp.allclose(out, ref_bf16, atol=1e-2, rtol=1e-2)

    # Sanity check against the full-f32 PyTorch-equivalent forward (looser tol: bf16 weights).
    ref_f32 = jnp.maximum(xf @ w1 + b1, 0.0) @ w2 + b2
    assert jnp.allclose(out, ref_f32, atol=5e-2, rtol=5e-2)

    print("KERNEL_OK")
</pallas_src>

<mosaic_0001>
module attributes {stable_mosaic.version = 11 : i64} {
  func.func @mlp_kernel(%arg0: i32, %arg1: memref<8x896xbf16, #tpu.memory_space<vmem>>, %arg2: memref<896x512xbf16, #tpu.memory_space<vmem>>, %arg3: memref<1x512xf32, #tpu.memory_space<vmem>>, %arg4: memref<512x128xbf16, #tpu.memory_space<vmem>>, %arg5: memref<1x128xf32, #tpu.memory_space<vmem>>, %arg6: memref<8x128xf32, #tpu.memory_space<vmem>>) attributes {dimension_semantics = [#tpu.dimension_semantics<parallel>], iteration_bounds = array<i64: 1>, scalar_prefetch = 0 : i64, scratch_operands = 0 : i64, tpu.core_type = #tpu.core_type<tc>, window_params = [{transform_indices = @transform_0, window_bounds = array<i64: 8, 896>}, {pipeline_mode = #tpu.pipeline_mode<synchronous>, transform_indices = @transform_1, window_bounds = array<i64: 896, 512>}, {pipeline_mode = #tpu.pipeline_mode<synchronous>, transform_indices = @transform_2, window_bounds = array<i64: 1, 512>}, {pipeline_mode = #tpu.pipeline_mode<synchronous>, transform_indices = @transform_3, window_bounds = array<i64: 512, 128>}, {pipeline_mode = #tpu.pipeline_mode<synchronous>, transform_indices = @transform_4, window_bounds = array<i64: 1, 128>}, {transform_indices = @transform_5, window_bounds = array<i64: 8, 128>}]} {
    %c0 = arith.constant 0 : index
    %c0_0 = arith.constant 0 : index
    %0 = vector.load %arg1[%c0, %c0_0] : memref<8x896xbf16, #tpu.memory_space<vmem>>, vector<8x896xbf16>
    %c0_1 = arith.constant 0 : index
    %c0_2 = arith.constant 0 : index
    %1 = vector.load %arg2[%c0_1, %c0_2] : memref<896x512xbf16, #tpu.memory_space<vmem>>, vector<896x512xbf16>
    %cst = arith.constant dense<0.000000e+00> : vector<8x512xf32>
    %2 = tpu.matmul %0, %1, %cst {dimension_numbers = #tpu.dot_dimension_numbers<[1], [0], [0], [1], [0, 0, 1, 1], [], []>} : vector<8x896xbf16>, vector<896x512xbf16>, vector<8x512xf32> -> vector<8x512xf32>
    %c0_3 = arith.constant 0 : index
    %c0_4 = arith.constant 0 : index
    %3 = vector.load %arg3[%c0_3, %c0_4] : memref<1x512xf32, #tpu.memory_space<vmem>>, vector<1x512xf32>
    %4 = vector.broadcast %3 : vector<1x512xf32> to vector<8x512xf32>
    %5 = arith.addf %2, %4 : vector<8x512xf32>
    %cst_5 = arith.constant 0.000000e+00 : f32
    %6 = vector.broadcast %cst_5 : f32 to vector<8x512xf32>
    %7 = arith.maximumf %5, %6 : vector<8x512xf32>
    %8 = arith.truncf %7 : vector<8x512xf32> to vector<8x512xbf16>
    %c0_6 = arith.constant 0 : index
    %c0_7 = arith.constant 0 : index
    %9 = vector.load %arg4[%c0_6, %c0_7] : memref<512x128xbf16, #tpu.memory_space<vmem>>, vector<512x128xbf16>
    %cst_8 = arith.constant dense<0.000000e+00> : vector<8x128xf32>
    %10 = tpu.matmul %8, %9, %cst_8 {dimension_numbers = #tpu.dot_dimension_numbers<[1], [0], [0], [1], [0, 0, 1, 1], [], []>} : vector<8x512xbf16>, vector<512x128xbf16>, vector<8x128xf32> -> vector<8x128xf32>
    %c0_9 = arith.constant 0 : index
    %c0_10 = arith.constant 0 : index
    %11 = vector.load %arg5[%c0_9, %c0_10] : memref<1x128xf32, #tpu.memory_space<vmem>>, vector<1x128xf32>
    %12 = vector.broadcast %11 : vector<1x128xf32> to vector<8x128xf32>
    %13 = arith.addf %10, %12 : vector<8x128xf32>
    %c0_11 = arith.constant 0 : index
    %c0_12 = arith.constant 0 : index
    %14 = vector.load %arg6[%c0_11, %c0_12] : memref<8x128xf32, #tpu.memory_space<vmem>>, vector<8x128xf32>
    tpu.vector_store %arg6[%c0_11, %c0_12], %13 {strides = array<i32>} : memref<8x128xf32, #tpu.memory_space<vmem>>, vector<8x128xf32>,
    return
  }
  func.func @transform_0(%arg0: i32) -> (i32, i32) {
    %c0_i32 = arith.constant 0 : i32
    %c0_i32_0 = arith.constant 0 : i32
    return %arg0, %c0_i32 : i32, i32
  }
  func.func @transform_1(%arg0: i32) -> (i32, i32) {
    %c0_i32 = arith.constant 0 : i32
    %c0_i32_0 = arith.constant 0 : i32
    %c0_i32_1 = arith.constant 0 : i32
    return %c0_i32, %c0_i32_0 : i32, i32
  }
  func.func @transform_2(%arg0: i32) -> (i32, i32) {
    %c0_i32 = arith.constant 0 : i32
    %c0_i32_0 = arith.constant 0 : i32
    %c0_i32_1 = arith.constant 0 : i32
    return %c0_i32, %c0_i32_0 : i32, i32
  }
  func.func @transform_3(%arg0: i32) -> (i32, i32) {
    %c0_i32 = arith.constant 0 : i32
    %c0_i32_0 = arith.constant 0 : i32
    %c0_i32_1 = arith.constant 0 : i32
    return %c0_i32, %c0_i32_0 : i32, i32
  }
  func.func @transform_4(%arg0: i32) -> (i32, i32) {
    %c0_i32 = arith.constant 0 : i32
    %c0_i32_0 = arith.constant 0 : i32
    %c0_i32_1 = arith.constant 0 : i32
    return %c0_i32, %c0_i32_0 : i32, i32
  }
  func.func @transform_5(%arg0: i32) -> (i32, i32) {
    %c0_i32 = arith.constant 0 : i32
    %c0_i32_0 = arith.constant 0 : i32
    return %arg0, %c0_i32 : i32, i32
  }
}

</mosaic_0001>

<llo_original>
// kernel: simple_nn_forward.1
$region0: #{simple_nn_forward.1}
  #allocation0 [shape = 'u32[]', space=smem, size = 0x4, offset = 0x4, fixed_abs, tag = 'smem constant byte address 0x4 - core index']
  #allocation1 [shape = 'u32[144,128]{1,0:T(1,128)}', space=vmem, size = 0x12000, scoped, tag = 'internal scratch']
  %s0 = inlined_call_operand.vmem [shape: bf16[8,896], index: 0, kind: input, shape index: {}]
  %s1 = inlined_call_operand.vmem [shape: bf16[896,512], index: 1, kind: input, shape index: {}]
  %s2 = inlined_call_operand.vmem [shape: f32[1,512], index: 2, kind: input, shape index: {}]
  %s3 = inlined_call_operand.vmem [shape: bf16[512,128], index: 3, kind: input, shape index: {}]
  %s4 = inlined_call_operand.vmem [shape: f32[1,128], index: 4, kind: input, shape index: {}]
  %s5 = inlined_call_operand.vmem [shape: f32[8,128], index: 5, kind: output, shape index: {}]
  %s6 = sld [smem:[#allocation0]]
  $region30: #{simple_nn_forward.1} parent=0
    _
  %s8 = ssub.s32 1, %s6
  %s9 = scalar_select 0, %s8, %s6
  // Predicated region
  $region2: #{simple_nn_forward.1} parent=0 // pred_check
    _
  $region3: #{simple_nn_forward.1} parent=0 // pred_check_branch
    %11 = sbr.rel (0) target = $region5
  $region4: #{simple_nn_forward.1} parent=0 // pred_region
    _
  $region5: #{simple_nn_forward.1} parent=0 // pred_fallthru
    _
  // Predicated region
  $region6: #{simple_nn_forward.1} parent=0 // pred_check
    _
  $region7: #{simple_nn_forward.1} parent=0 // pred_check_branch
    %13 = sbr.rel (0) target = $region9
  $region8: #{simple_nn_forward.1} parent=0 // pred_region
    _
  $region9: #{simple_nn_forward.1} parent=0 // pred_fallthru
    _
  // Predicated region
  $region10: #{simple_nn_forward.1} parent=0 // pred_check
    _
  $region11: #{simple_nn_forward.1} parent=0 // pred_check_branch
    %15 = sbr.rel (0) target = $region13
  $region12: #{simple_nn_forward.1} parent=0 // pred_region
    _
  $region13: #{simple_nn_forward.1} parent=0 // pred_fallthru
    _
  // Predicated region
  $region14: #{simple_nn_forward.1} parent=0 // pred_check
    _
  $region15: #{simple_nn_forward.1} parent=0 // pred_check_branch
    %17 = sbr.rel (0) target = $region17
  $region16: #{simple_nn_forward.1} parent=0 // pred_region
    _
  $region17: #{simple_nn_forward.1} parent=0 // pred_fallthru
    _
  // Predicated region
  $region18: #{simple_nn_forward.1} parent=0 // pred_check
    _
  $region19: #{simple_nn_forward.1} parent=0 // pred_check_branch
    %19 = sbr.rel (0) target = $region21
  $region20: #{simple_nn_forward.1} parent=0 // pred_region
    _
  $region21: #{simple_nn_forward.1} parent=0 // pred_fallthru
    _
  %v21 = vld [vmem:[%s0] sm:$0xff]
  %v22 = vld [vmem:[%s0 + $0x8] sm:$0xff]
  %v23 = vld [vmem:[%s0 + $0x10] sm:$0xff]
  %v24 = vld [vmem:[%s0 + $0x18] sm:$0xf]
  %v25 = vld [vmem:[%s1] sm:$0xff]
  %v26 = vld [vmem:[%s1 + $0x8] sm:$0xff]
  %v27 = vld [vmem:[%s1 + $0x10] sm:$0xff]
  %v28 = vld [vmem:[%s1 + $0x18] sm:$0xff]
  %v29 = vld [vmem:[%s1 + $0x20] sm:$0xff]
  %v30 = vld [vmem:[%s1 + $0x28] sm:$0xff]
  %v31 = vld [vmem:[%s1 + $0x30] sm:$0xff]
  %v32 = vld [vmem:[%s1 + $0x38] sm:$0xff]
  %v33 = vld [vmem:[%s1 + $0x40] sm:$0xff]
  %v34 = vld [vmem:[%s1 + $0x48] sm:$0xff]
  %v35 = vld [vmem:[%s1 + $0x50] sm:$0xff]
  %v36 = vld [vmem:[%s1 + $0x58] sm:$0xff]
  %v37 = vld [vmem:[%s1 + $0x60] sm:$0xff]
  %v38 = vld [vmem:[%s1 + $0x68] sm:$0xff]
  %v39 = vld [vmem:[%s1 + $0x70] sm:$0xff]
  %v40 = vld [vmem:[%s1 + $0x78] sm:$0xff]
  %v41 = vld [vmem:[%s1 + $0x80] sm:$0xff]
  %v42 = vld [vmem:[%s1 + $0x88] sm:$0xff]
  %v43 = vld [vmem:[%s1 + $0x90] sm:$0xff]
  %v44 = vld [vmem:[%s1 + $0x98] sm:$0xff]
  %v45 = vld [vmem:[%s1 + $0xa0] sm:$0xff]
  %v46 = vld [vmem:[%s1 + $0xa8] sm:$0xff]
  %v47 = vld [vmem:[%s1 + $0xb0] sm:$0xff]
  %v48 = vld [vmem:[%s1 + $0xb8] sm:$0xff]
  %v49 = vld [vmem:[%s1 + $0xc0] sm:$0xff]
  %v50 = vld [vmem:[%s1 + $0xc8] sm:$0xff]
  %v51 = vld [vmem:[%s1 + $0xd0] sm:$0xff]
  %v52 = vld [vmem:[%s1 + $0xd8] sm:$0xff]
  %v53 = vld [vmem:[%s1 + $0xe0] sm:$0xff]
  %v54 = vld [vmem:[%s1 + $0xe8] sm:$0xff]
  %v55 = vld [vmem:[%s1 + $0xf0] sm:$0xff]
  %v56 = vld [vmem:[%s1 + $0xf8] sm:$0xff]
  %v57 = vld [vmem:[%s1 + $0x100] sm:$0xff]
  %v58 = vld [vmem:[%s1 + $0x108] sm:$0xff]
  %v59 = vld [vmem:[%s1 + $0x110] sm:$0xff]
  %v60 = vld [vmem:[%s1 + $0x118] sm:$0xff]
  %v61 = vld [vmem:[%s1 + $0x120] sm:$0xff]
  %v62 = vld [vmem:[%s1 + $0x128] sm:$0xff]
  %v63 = vld [vmem:[%s1 + $0x130] sm:$0xff]
  %v64 = vld [vmem:[%s1 + $0x138] sm:$0xff]
  %v65 = vld [vmem:[%s1 + $0x140] sm:$0xff]
  %v66 = vld [vmem:[%s1 + $0x148] sm:$0xff]
  %v67 = vld [vmem:[%s1 + $0x150] sm:$0xff]
  %v68 = vld [vmem:[%s1 + $0x158] sm:$0xff]
  %v69 = vld [vmem:[%s1 + $0x160] sm:$0xff]
  %v70 = vld [vmem:[%s1 + $0x168] sm:$0xff]
  %v71 = vld [vmem:[%s1 + $0x170] sm:$0xff]
  %v72 = vld [vmem:[%s1 + $0x178] sm:$0xff]
  %v73 = vld [vmem:[%s1 + $0x180] sm:$0xff]
  %v74 = vld [vmem:[%s1 + $0x188] sm:$0xff]
  %v75 = vld [vmem:[%s1 + $0x190] sm:$0xff]
  %v76 = vld [vmem:[%s1 + $0x198] sm:$0xff]
  %v77 = vld [vmem:[%s1 + $0x1a0] sm:$0xff]
  %v78 = vld [vmem:[%s1 + $0x1a8] sm:$0xff]
  %v79 = vld [vmem:[%s1 + $0x1b0] sm:$0xff]
  %v80 = vld [vmem:[%s1 + $0x1b8] sm:$0xff]
  %v81 = vld [vmem:[%s1 + $0x1c0] sm:$0xff]
  %v82 = vld [vmem:[%s1 + $0x1c8] sm:$0xff]
  %v83 = vld [vmem:[%s1 + $0x1d0] sm:$0xff]
  %v84 = vld [vmem:[%s1 + $0x1d8] sm:$0xff]
  %v85 = vld [vmem:[%s1 + $0x1e0] sm:$0xff]
  %v86 = vld [vmem:[%s1 + $0x1e8] sm:$0xff]
  %v87 = vld [vmem:[%s1 + $0x1f0] sm:$0xff]
  %v88 = vld [vmem:[%s1 + $0x1f8] sm:$0xff]
  %v89 = vld [vmem:[%s1 + $0x200] sm:$0xff]
  %v90 = vld [vmem:[%s1 + $0x208] sm:$0xff]
  %v91 = vld [vmem:[%s1 + $0x210] sm:$0xff]
  %v92 = vld [vmem:[%s1 + $0x218] sm:$0xff]
  %v93 = vld [vmem:[%s1 + $0x220] sm:$0xff]
  %v94 = vld [vmem:[%s1 + $0x228] sm:$0xff]
  %v95 = vld [vmem:[%s1 + $0x230] sm:$0xff]
  %v96 = vld [vmem:[%s1 + $0x238] sm:$0xff]
  %v97 = vld [vmem:[%s1 + $0x240] sm:$0xff]
  %v98 = vld [vmem:[%s1 + $0x248] sm:$0xff]
  %v99 = vld [vmem:[%s1 + $0x250] sm:$0xff]
  %v100 = vld [vmem:[%s1 + $0x258] sm:$0xff]
  %v101 = vld [vmem:[%s1 + $0x260] sm:$0xff]
  %v102 = vld [vmem:[%s1 + $0x268] sm:$0xff]
  %v103 = vld [vmem:[%s1 + $0x270] sm:$0xff]
  %v104 = vld [vmem:[%s1 + $0x278] sm:$0xff]
  %v105 = vld [vmem:[%s1 + $0x280] sm:$0xff]
  %v106 = vld [vmem:[%s1 + $0x288] sm:$0xff]
  %v107 = vld [vmem:[%s1 + $0x290] sm:$0xff]
  %v108 = vld [vmem:[%s1 + $0x298] sm:$0xff]
  %v109 = vld [vmem:[%s1 + $0x2a0] sm:$0xff]
  %v110 = vld [vmem:[%s1 + $0x2a8] sm:$0xff]
  %v111 = vld [vmem:[%s1 + $0x2b0] sm:$0xff]
  %v112 = vld [vmem:[%s1 + $0x2b8] sm:$0xff]
  %v113 = vld [vmem:[%s1 + $0x2c0] sm:$0xff]
  %v114 = vld [vmem:[%s1 + $0x2c8] sm:$0xff]
  %v115 = vld [vmem:[%s1 + $0x2d0] sm:$0xff]
  %v116 = vld [vmem:[%s1 + $0x2d8] sm:$0xff]
  %v117 = vld [vmem:[%s1 + $0x2e0] sm:$0xff]
  %v118 = vld [vmem:[%s1 + $0x2e8] sm:$0xff]
  %v119 = vld [vmem:[%s1 + $0x2f0] sm:$0xff]
  %v120 = vld [vmem:[%s1 + $0x2f8] sm:$0xff]
  %v121 = vld [vmem:[%s1 + $0x300] sm:$0xff]
  %v122 = vld [vmem:[%s1 + $0x308] sm:$0xff]
  %v123 = vld [vmem:[%s1 + $0x310] sm:$0xff]
  %v124 = vld [vmem:[%s1 + $0x318] sm:$0xff]
  %v125 = vld [vmem:[%s1 + $0x320] sm:$0xff]
  %v126 = vld [vmem:[%s1 + $0x328] sm:$0xff]
  %v127 = vld [vmem:[%s1 + $0x330] sm:$0xff]
  %v128 = vld [vmem:[%s1 + $0x338] sm:$0xff]
  %v129 = vld [vmem:[%s1 + $0x340] sm:$0xff]
  %v130 = vld [vmem:[%s1 + $0x348] sm:$0xff]
  %v131 = vld [vmem:[%s1 + $0x350] sm:$0xff]
  %v132 = vld [vmem:[%s1 + $0x358] sm:$0xff]
  %v133 = vld [vmem:[%s1 + $0x360] sm:$0xff]
  %v134 = vld [vmem:[%s1 + $0x368] sm:$0xff]
  %v135 = vld [vmem:[%s1 + $0x370] sm:$0xff]
  %v136 = vld [vmem:[%s1 + $0x378] sm:$0xff]
  %v137 = vld [vmem:[%s1 + $0x380] sm:$0xff]
  %v138 = vld [vmem:[%s1 + $0x388] sm:$0xff]
  %v139 = vld [vmem:[%s1 + $0x390] sm:$0xff]
  %v140 = vld [vmem:[%s1 + $0x398] sm:$0xff]
  %v141 = vld [vmem:[%s1 + $0x3a0] sm:$0xff]
  %v142 = vld [vmem:[%s1 + $0x3a8] sm:$0xff]
  %v143 = vld [vmem:[%s1 + $0x3b0] sm:$0xff]
  %v144 = vld [vmem:[%s1 + $0x3b8] sm:$0xff]
  %v145 = vld [vmem:[%s1 + $0x3c0] sm:$0xff]
  %v146 = vld [vmem:[%s1 + $0x3c8] sm:$0xff]
  %v147 = vld [vmem:[%s1 + $0x3d0] sm:$0xff]
  %v148 = vld [vmem:[%s1 + $0x3d8] sm:$0xff]
  %v149 = vld [vmem:[%s1 + $0x3e0] sm:$0xff]
  %v150 = vld [vmem:[%s1 + $0x3e8] sm:$0xff]
  %v151 = vld [vmem:[%s1 + $0x3f0] sm:$0xff]
  %v152 = vld [vmem:[%s1 + $0x3f8] sm:$0xff]
  %v153 = vld [vmem:[%s1 + $0x400] sm:$0xff]
  %v154 = vld [vmem:[%s1 + $0x408] sm:$0xff]
  %v155 = vld [vmem:[%s1 + $0x410] sm:$0xff]
  %v156 = vld [vmem:[%s1 + $0x418] sm:$0xff]
  %v157 = vld [vmem:[%s1 + $0x420] sm:$0xff]
  %v158 = vld [vmem:[%s1 + $0x428] sm:$0xff]
  %v159 = vld [vmem:[%s1 + $0x430] sm:$0xff]
  %v160 = vld [vmem:[%s1 + $0x438] sm:$0xff]
  %v161 = vld [vmem:[%s1 + $0x440] sm:$0xff]
  %v162 = vld [vmem:[%s1 + $0x448] sm:$0xff]
  %v163 = vld [vmem:[%s1 + $0x450] sm:$0xff]
  %v164 = vld [vmem:[%s1 + $0x458] sm:$0xff]
  %v165 = vld [vmem:[%s1 + $0x460] sm:$0xff]
  %v166 = vld [vmem:[%s1 + $0x468] sm:$0xff]
  %v167 = vld [vmem:[%s1 + $0x470] sm:$0xff]
  %v168 = vld [vmem:[%s1 + $0x478] sm:$0xff]
  %v169 = vld [vmem:[%s1 + $0x480] sm:$0xff]
  %v170 = vld [vmem:[%s1 + $0x488] sm:$0xff]
  %v171 = vld [vmem:[%s1 + $0x490] sm:$0xff]
  %v172 = vld [vmem:[%s1 + $0x498] sm:$0xff]
  %v173 = vld [vmem:[%s1 + $0x4a0] sm:$0xff]
  %v174 = vld [vmem:[%s1 + $0x4a8] sm:$0xff]
  %v175 = vld [vmem:[%s1 + $0x4b0] sm:$0xff]
  %v176 = vld [vmem:[%s1 + $0x4b8] sm:$0xff]
  %v177 = vld [vmem:[%s1 + $0x4c0] sm:$0xff]
  %v178 = vld [vmem:[%s1 + $0x4c8] sm:$0xff]
  %v179 = vld [vmem:[%s1 + $0x4d0] sm:$0xff]
  %v180 = vld [vmem:[%s1 + $0x4d8] sm:$0xff]
  %v181 = vld [vmem:[%s1 + $0x4e0] sm:$0xff]
  %v182 = vld [vmem:[%s1 + $0x4e8] sm:$0xff]
  %v183 = vld [vmem:[%s1 + $0x4f0] sm:$0xff]
  %v184 = vld [vmem:[%s1 + $0x4f8] sm:$0xff]
  %v185 = vld [vmem:[%s1 + $0x500] sm:$0xff]
  %v186 = vld [vmem:[%s1 + $0x508] sm:$0xff]
  %v187 = vld [vmem:[%s1 + $0x510] sm:$0xff]
  %v188 = vld [vmem:[%s1 + $0x518] sm:$0xff]
  %v189 = vld [vmem:[%s1 + $0x520] sm:$0xff]
  %v190 = vld [vmem:[%s1 + $0x528] sm:$0xff]
  %v191 = vld [vmem:[%s1 + $0x530] sm:$0xff]
  %v192 = vld [vmem:[%s1 + $0x538] sm:$0xff]
  %v193 = vld [vmem:[%s1 + $0x540] sm:$0xff]
  %v194 = vld [vmem:[%s1 + $0x548] sm:$0xff]
  %v195 = vld [vmem:[%s1 + $0x550] sm:$0xff]
  %v196 = vld [vmem:[%s1 + $0x558] sm:$0xff]
  %v197 = vld [vmem:[%s1 + $0x560] sm:$0xff]
  %v198 = vld [vmem:[%s1 + $0x568] sm:$0xff]
  %v199 = vld [vmem:[%s1 + $0x570] sm:$0xff]
  %v200 = vld [vmem:[%s1 + $0x578] sm:$0xff]
  %v201 = vld [vmem:[%s1 + $0x580] sm:$0xff]
  %v202 = vld [vmem:[%s1 + $0x588] sm:$0xff]
  %v203 = vld [vmem:[%s1 + $0x590] sm:$0xff]
  %v204 = vld [vmem:[%s1 + $0x598] sm:$0xff]
  %v205 = vld [vmem:[%s1 + $0x5a0] sm:$0xff]
  %v206 = vld [vmem:[%s1 + $0x5a8] sm:$0xff]
  %v207 = vld [vmem:[%s1 + $0x5b0] sm:$0xff]
  %v208 = vld [vmem:[%s1 + $0x5b8] sm:$0xff]
  %v209 = vld [vmem:[%s1 + $0x5c0] sm:$0xff]
  %v210 = vld [vmem:[%s1 + $0x5c8] sm:$0xff]
  %v211 = vld [vmem:[%s1 + $0x5d0] sm:$0xff]
  %v212 = vld [vmem:[%s1 + $0x5d8] sm:$0xff]
  %v213 = vld [vmem:[%s1 + $0x5e0] sm:$0xff]
  %v214 = vld [vmem:[%s1 + $0x5e8] sm:$0xff]
  %v215 = vld [vmem:[%s1 + $0x5f0] sm:$0xff]
  %v216 = vld [vmem:[%s1 + $0x5f8] sm:$0xff]
  %v217 = vld [vmem:[%s1 + $0x600] sm:$0xff]
  %v218 = vld [vmem:[%s1 + $0x608] sm:$0xff]
  %v219 = vld [vmem:[%s1 + $0x610] sm:$0xff]
  %v220 = vld [vmem:[%s1 + $0x618] sm:$0xff]
  %v221 = vld [vmem:[%s1 + $0x620] sm:$0xff]
  %v222 = vld [vmem:[%s1 + $0x628] sm:$0xff]
  %v223 = vld [vmem:[%s1 + $0x630] sm:$0xff]
  %v224 = vld [vmem:[%s1 + $0x638] sm:$0xff]
  %v225 = vld [vmem:[%s1 + $0x640] sm:$0xff]
  %v226 = vld [vmem:[%s1 + $0x648] sm:$0xff]
  %v227 = vld [vmem:[%s1 + $0x650] sm:$0xff]
  %v228 = vld [vmem:[%s1 + $0x658] sm:$0xff]
  %v229 = vld [vmem:[%s1 + $0x660] sm:$0xff]
  %v230 = vld [vmem:[%s1 + $0x668] sm:$0xff]
  %v231 = vld [vmem:[%s1 + $0x670] sm:$0xff]
  %v232 = vld [vmem:[%s1 + $0x678] sm:$0xff]
  %v233 = vld [vmem:[%s1 + $0x680] sm:$0xff]
  %v234 = vld [vmem:[%s1 + $0x688] sm:$0xff]
  %v235 = vld [vmem:[%s1 + $0x690] sm:$0xff]
  %v236 = vld [vmem:[%s1 + $0x698] sm:$0xff]
  %v237 = vld [vmem:[%s1 + $0x6a0] sm:$0xff]
  %v238 = vld [vmem:[%s1 + $0x6a8] sm:$0xff]
  %v239 = vld [vmem:[%s1 + $0x6b0] sm:$0xff]
  %v240 = vld [vmem:[%s1 + $0x6b8] sm:$0xff]
  %v241 = vld [vmem:[%s1 + $0x6c0] sm:$0xff]
  %v242 = vld [vmem:[%s1 + $0x6c8] sm:$0xff]
  %v243 = vld [vmem:[%s1 + $0x6d0] sm:$0xff]
  %v244 = vld [vmem:[%s1 + $0x6d8] sm:$0xff]
  %v245 = vld [vmem:[%s1 + $0x6e0] sm:$0xff]
  %v246 = vld [vmem:[%s1 + $0x6e8] sm:$0xff]
  %v247 = vld [vmem:[%s1 + $0x6f0] sm:$0xff]
  %v248 = vld [vmem:[%s1 + $0x6f8] sm:$0xff]
  %v249 = vld [vmem:[%s2] sm:$0xf]
  %v251 = vlaneseq
  %v252 = vshrl.u32 %v251, 7
  %v253 = vsub.s32 0, %v252
  %v254 = vrot.slane %v249, %v253
  %v255 = vlaneseq
  %v256 = vshrl.u32 %v255, 7
  %v257 = vsub.s32 1, %v256
  %v258 = vrot.slane %v249, %v257
  %v259 = vlaneseq
  %v260 = vshrl.u32 %v259, 7
  %v261 = vsub.s32 2, %v260
  %v262 = vrot.slane %v249, %v261
  %v263 = vlaneseq
  %v264 = vshrl.u32 %v263, 7
  %v265 = vsub.s32 3, %v264
  %v266 = vrot.slane %v249, %v265
  %v275 = vunpack.c.l.b16 %v21
  %v276 = vunpack.c.h.b16 %v21
  %v277 = vunpack.c.l.b16 %v22
  %v278 = vunpack.c.h.b16 %v22
  %v279 = vunpack.c.l.b16 %v23
  %v280 = vunpack.c.h.b16 %v23
  %v281 = vunpack.c.l.b16 %v24
  %v282 = vpack.c.b16 %v275, %v275
  %v283 = vpack.c.b16 %v276, %v276
  %v284 = vpack.c.b16 %v277, %v277
  %v285 = vpack.c.b16 %v278, %v278
  %v286 = vpack.c.b16 %v279, %v279
  %v287 = vpack.c.b16 %v280, %v280
  %v288 = vpack.c.b16 %v281, %v281
  %v520 = vunpack.c.l.b16 %v25
  %v521 = vunpack.c.h.b16 %v25
  %v522 = vunpack.c.l.b16 %v26
  %v523 = vunpack.c.h.b16 %v26
  %v524 = vunpack.c.l.b16 %v27
  %v525 = vunpack.c.h.b16 %v27
  %v526 = vunpack.c.l.b16 %v28
  %v527 = vunpack.c.h.b16 %v28
  %v528 = vunpack.c.l.b16 %v29
  %v529 = vunpack.c.h.b16 %v29
  %v530 = vunpack.c.l.b16 %v30
  %v531 = vunpack.c.h.b16 %v30
  %v532 = vunpack.c.l.b16 %v31
  %v533 = vunpack.c.h.b16 %v31
  %v534 = vunpack.c.l.b16 %v32
  %v535 = vunpack.c.h.b16 %v32
  %v536 = vunpack.c.l.b16 %v33
  %v537 = vunpack.c.h.b16 %v33
  %v538 = vunpack.c.l.b16 %v34
  %v539 = vunpack.c.h.b16 %v34
  %v540 = vunpack.c.l.b16 %v35
  %v541 = vunpack.c.h.b16 %v35
  %v542 = vunpack.c.l.b16 %v36
  %v543 = vunpack.c.h.b16 %v36
  %v544 = vunpack.c.l.b16 %v37
  %v545 = vunpack.c.h.b16 %v37
  %v546 = vunpack.c.l.b16 %v38
  %v547 = vunpack.c.h.b16 %v38
  %v548 = vunpack.c.l.b16 %v39
  %v549 = vunpack.c.h.b16 %v39
  %v550 = vunpack.c.l.b16 %v40
  %v551 = vunpack.c.h.b16 %v40
  %v552 = vunpack.c.l.b16 %v41
  %v553 = vunpack.c.h.b16 %v41
  %v554 = vunpack.c.l.b16 %v42
  %v555 = vunpack.c.h.b16 %v42
  %v556 = vunpack.c.l.b16 %v43
  %v557 = vunpack.c.h.b16 %v43
  %v558 = vunpack.c.l.b16 %v44
  %v559 = vunpack.c.h.b16 %v44
  %v560 = vunpack.c.l.b16 %v45
  %v561 = vunpack.c.h.b16 %v45
  %v562 = vunpack.c.l.b16 %v46
  %v563 = vunpack.c.h.b16 %v46
  %v564 = vunpack.c.l.b16 %v47
  %v565 = vunpack.c.h.b16 %v47
  %v566 = vunpack.c.l.b16 %v48
  %v567 = vunpack.c.h.b16 %v48
  %v568 = vunpack.c.l.b16 %v49
  %v569 = vunpack.c.h.b16 %v49
  %v570 = vunpack.c.l.b16 %v50
  %v571 = vunpack.c.h.b16 %v50
  %v572 = vunpack.c.l.b16 %v51
  %v573 = vunpack.c.h.b16 %v51
  %v574 = vunpack.c.l.b16 %v52
  %v575 = vunpack.c.h.b16 %v52
  %v576 = vunpack.c.l.b16 %v53
  %v577 = vunpack.c.h.b16 %v53
  %v578 = vunpack.c.l.b16 %v54
  %v579 = vunpack.c.h.b16 %v54
  %v580 = vunpack.c.l.b16 %v55
  %v581 = vunpack.c.h.b16 %v55
  %v582 = vunpack.c.l.b16 %v56
  %v583 = vunpack.c.h.b16 %v56
  %v584 = vunpack.c.l.b16 %v57
  %v585 = vunpack.c.h.b16 %v57
  %v586 = vunpack.c.l.b16 %v58
  %v587 = vunpack.c.h.b16 %v58
  %v588 = vunpack.c.l.b16 %v59
  %v589 = vunpack.c.h.b16 %v59
  %v590 = vunpack.c.l.b16 %v60
  %v591 = vunpack.c.h.b16 %v60
  %v592 = vunpack.c.l.b16 %v61
  %v593 = vunpack.c.h.b16 %v61
  %v594 = vunpack.c.l.b16 %v62
  %v595 = vunpack.c.h.b16 %v62
  %v596 = vunpack.c.l.b16 %v63
  %v597 = vunpack.c.h.b16 %v63
  %v598 = vunpack.c.l.b16 %v64
  %v599 = vunpack.c.h.b16 %v64
  %v600 = vunpack.c.l.b16 %v65
  %v601 = vunpack.c.h.b16 %v65
  %v602 = vunpack.c.l.b16 %v66
  %v603 = vunpack.c.h.b16 %v66
  %v604 = vunpack.c.l.b16 %v67
  %v605 = vunpack.c.h.b16 %v67
  %v606 = vunpack.c.l.b16 %v68
  %v607 = vunpack.c.h.b16 %v68
  %v608 = vunpack.c.l.b16 %v69
  %v609 = vunpack.c.h.b16 %v69
  %v610 = vunpack.c.l.b16 %v70
  %v611 = vunpack.c.h.b16 %v70
  %v612 = vunpack.c.l.b16 %v71
  %v613 = vunpack.c.h.b16 %v71
  %v614 = vunpack.c.l.b16 %v72
  %v615 = vunpack.c.h.b16 %v72
  %v616 = vunpack.c.l.b16 %v73
  %v617 = vunpack.c.h.b16 %v73
  %v618 = vunpack.c.l.b16 %v74
  %v619 = vunpack.c.h.b16 %v74
  %v620 = vunpack.c.l.b16 %v75
  %v621 = vunpack.c.h.b16 %v75
  %v622 = vunpack.c.l.b16 %v76
  %v623 = vunpack.c.h.b16 %v76
  %v624 = vunpack.c.l.b16 %v77
  %v625 = vunpack.c.h.b16 %v77
  %v626 = vunpack.c.l.b16 %v78
  %v627 = vunpack.c.h.b16 %v78
  %v628 = vunpack.c.l.b16 %v79
  %v629 = vunpack.c.h.b16 %v79
  %v630 = vunpack.c.l.b16 %v80
  %v631 = vunpack.c.h.b16 %v80
  %v632 = vunpack.c.l.b16 %v81
  %v633 = vunpack.c.h.b16 %v81
  %v634 = vunpack.c.l.b16 %v82
  %v635 = vunpack.c.h.b16 %v82
  %v636 = vunpack.c.l.b16 %v83
  %v637 = vunpack.c.h.b16 %v83
  %v638 = vunpack.c.l.b16 %v84
  %v639 = vunpack.c.h.b16 %v84
  %v640 = vunpack.c.l.b16 %v85
  %v641 = vunpack.c.h.b16 %v85
  %v642 = vunpack.c.l.b16 %v86
  %v643 = vunpack.c.h.b16 %v86
  %v644 = vunpack.c.l.b16 %v87
  %v645 = vunpack.c.h.b16 %v87
  %v646 = vunpack.c.l.b16 %v88
  %v647 = vunpack.c.h.b16 %v88
  %v648 = vunpack.c.l.b16 %v89
  %v649 = vunpack.c.h.b16 %v89
  %v650 = vunpack.c.l.b16 %v90
  %v651 = vunpack.c.h.b16 %v90
  %v652 = vunpack.c.l.b16 %v91
  %v653 = vunpack.c.h.b16 %v91
  %v654 = vunpack.c.l.b16 %v92
  %v655 = vunpack.c.h.b16 %v92
  %v656 = vunpack.c.l.b16 %v93
  %v657 = vunpack.c.h.b16 %v93
  %v658 = vunpack.c.l.b16 %v94
  %v659 = vunpack.c.h.b16 %v94
  %v660 = vunpack.c.l.b16 %v95
  %v661 = vunpack.c.h.b16 %v95
  %v662 = vunpack.c.l.b16 %v96
  %v663 = vunpack.c.h.b16 %v96
  %v664 = vunpack.c.l.b16 %v97
  %v665 = vunpack.c.h.b16 %v97
  %v666 = vunpack.c.l.b16 %v98
  %v667 = vunpack.c.h.b16 %v98
  %v668 = vunpack.c.l.b16 %v99
  %v669 = vunpack.c.h.b16 %v99
  %v670 = vunpack.c.l.b16 %v100
  %v671 = vunpack.c.h.b16 %v100
  %v672 = vunpack.c.l.b16 %v101
  %v673 = vunpack.c.h.b16 %v101
  %v674 = vunpack.c.l.b16 %v102
  %v675 = vunpack.c.h.b16 %v102
  %v676 = vunpack.c.l.b16 %v103
  %v677 = vunpack.c.h.b16 %v103
  %v678 = vunpack.c.l.b16 %v104
  %v679 = vunpack.c.h.b16 %v104
  %v680 = vunpack.c.l.b16 %v105
  %v681 = vunpack.c.h.b16 %v105
  %v682 = vunpack.c.l.b16 %v106
  %v683 = vunpack.c.h.b16 %v106
  %v684 = vunpack.c.l.b16 %v107
  %v685 = vunpack.c.h.b16 %v107
  %v686 = vunpack.c.l.b16 %v108
  %v687 = vunpack.c.h.b16 %v108
  %v688 = vunpack.c.l.b16 %v109
  %v689 = vunpack.c.h.b16 %v109
  %v690 = vunpack.c.l.b16 %v110
  %v691 = vunpack.c.h.b16 %v110
  %v692 = vunpack.c.l.b16 %v111
  %v693 = vunpack.c.h.b16 %v111
  %v694 = vunpack.c.l.b16 %v112
  %v695 = vunpack.c.h.b16 %v112
  %v696 = vunpack.c.l.b16 %v113
  %v697 = vunpack.c.h.b16 %v113
  %v698 = vunpack.c.l.b16 %v114
  %v699 = vunpack.c.h.b16 %v114
  %v700 = vunpack.c.l.b16 %v115
  %v701 = vunpack.c.h.b16 %v115
  %v702 = vunpack.c.l.b16 %v116
  %v703 = vunpack.c.h.b16 %v116
  %v704 = vunpack.c.l.b16 %v117
  %v705 = vunpack.c.h.b16 %v117
  %v706 = vunpack.c.l.b16 %v118
  %v707 = vunpack.c.h.b16 %v118
  %v708 = vunpack.c.l.b16 %v119
  %v709 = vunpack.c.h.b16 %v119
  %v710 = vunpack.c.l.b16 %v120
  %v711 = vunpack.c.h.b16 %v120
  %v712 = vunpack.c.l.b16 %v121
  %v713 = vunpack.c.h.b16 %v121
  %v714 = vunpack.c.l.b16 %v122
  %v715 = vunpack.c.h.b16 %v122
  %v716 = vunpack.c.l.b16 %v123
  %v717 = vunpack.c.h.b16 %v123
  %v718 = vunpack.c.l.b16 %v124
  %v719 = vunpack.c.h.b16 %v124
  %v720 = vunpack.c.l.b16 %v125
  %v721 = vunpack.c.h.b16 %v125
  %v722 = vunpack.c.l.b16 %v126
  %v723 = vunpack.c.h.b16 %v126
  %v724 = vunpack.c.l.b16 %v127
  %v725 = vunpack.c.h.b16 %v127
  %v726 = vunpack.c.l.b16 %v128
  %v727 = vunpack.c.h.b16 %v128
  %v728 = vunpack.c.l.b16 %v129
  %v729 = vunpack.c.h.b16 %v129
  %v730 = vunpack.c.l.b16 %v130
  %v731 = vunpack.c.h.b16 %v130
  %v732 = vunpack.c.l.b16 %v131
  %v733 = vunpack.c.h.b16 %v131
  %v734 = vunpack.c.l.b16 %v132
  %v735 = vunpack.c.h.b16 %v132
  %v736 = vunpack.c.l.b16 %v133
  %v737 = vunpack.c.h.b16 %v133
  %v738 = vunpack.c.l.b16 %v134
  %v739 = vunpack.c.h.b16 %v134
  %v740 = vunpack.c.l.b16 %v135
  %v741 = vunpack.c.h.b16 %v135
  %v742 = vunpack.c.l.b16 %v136
  %v743 = vunpack.c.h.b16 %v136
  %v744 = vunpack.c.l.b16 %v137
  %v745 = vunpack.c.h.b16 %v137
  %v746 = vunpack.c.l.b16 %v138
  %v747 = vunpack.c.h.b16 %v138
  %v748 = vunpack.c.l.b16 %v139
  %v749 = vunpack.c.h.b16 %v139
  %v750 = vunpack.c.l.b16 %v140
  %v751 = vunpack.c.h.b16 %v140
  %v752 = vunpack.c.l.b16 %v141
  %v753 = vunpack.c.h.b16 %v141
  %v754 = vunpack.c.l.b16 %v142
  %v755 = vunpack.c.h.b16 %v142
  %v756 = vunpack.c.l.b16 %v143
  %v757 = vunpack.c.h.b16 %v143
  %v758 = vunpack.c.l.b16 %v144
  %v759 = vunpack.c.h.b16 %v144
  %v760 = vunpack.c.l.b16 %v145
  %v761 = vunpack.c.h.b16 %v145
  %v762 = vunpack.c.l.b16 %v146
  %v763 = vunpack.c.h.b16 %v146
  %v764 = vunpack.c.l.b16 %v147
  %v765 = vunpack.c.h.b16 %v147
  %v766 = vunpack.c.l.b16 %v148
  %v767 = vunpack.c.h.b16 %v148
  %v768 = vunpack.c.l.b16 %v149
  %v769 = vunpack.c.h.b16 %v149
  %v770 = vunpack.c.l.b16 %v150
  %v771 = vunpack.c.h.b16 %v150
  %v772 = vunpack.c.l.b16 %v151
  %v773 = vunpack.c.h.b16 %v151
  %v774 = vunpack.c.l.b16 %v152
  %v775 = vunpack.c.h.b16 %v152
  %v776 = vunpack.c.l.b16 %v153
  %v777 = vunpack.c.h.b16 %v153
  %v778 = vunpack.c.l.b16 %v154
  %v779 = vunpack.c.h.b16 %v154
  %v780 = vunpack.c.l.b16 %v155
  %v781 = vunpack.c.h.b16 %v155
  %v782 = vunpack.c.l.b16 %v156
  %v783 = vunpack.c.h.b16 %v156
  %v784 = vunpack.c.l.b16 %v157
  %v785 = vunpack.c.h.b16 %v157
  %v786 = vunpack.c.l.b16 %v158
  %v787 = vunpack.c.h.b16 %v158
  %v788 = vunpack.c.l.b16 %v159
  %v789 = vunpack.c.h.b16 %v159
  %v790 = vunpack.c.l.b16 %v160
  %v791 = vunpack.c.h.b16 %v160
  %v792 = vunpack.c.l.b16 %v161
  %v793 = vunpack.c.h.b16 %v161
  %v794 = vunpack.c.l.b16 %v162
  %v795 = vunpack.c.h.b16 %v162
  %v796 = vunpack.c.l.b16 %v163
  %v797 = vunpack.c.h.b16 %v163
  %v798 = vunpack.c.l.b16 %v164
  %v799 = vunpack.c.h.b16 %v164
  %v800 = vunpack.c.l.b16 %v165
  %v801 = vunpack.c.h.b16 %v165
  %v802 = vunpack.c.l.b16 %v166
  %v803 = vunpack.c.h.b16 %v166
  %v804 = vunpack.c.l.b16 %v167
  %v805 = vunpack.c.h.b16 %v167
  %v806 = vunpack.c.l.b16 %v168
  %v807 = vunpack.c.h.b16 %v168
  %v808 = vunpack.c.l.b16 %v169
  %v809 = vunpack.c.h.b16 %v169
  %v810 = vunpack.c.l.b16 %v170
  %v811 = vunpack.c.h.b16 %v170
  %v812 = vunpack.c.l.b16 %v171
  %v813 = vunpack.c.h.b16 %v171
  %v814 = vunpack.c.l.b16 %v172
  %v815 = vunpack.c.h.b16 %v172
  %v816 = vunpack.c.l.b16 %v173
  %v817 = vunpack.c.h.b16 %v173
  %v818 = vunpack.c.l.b16 %v174
  %v819 = vunpack.c.h.b16 %v174
  %v820 = vunpack.c.l.b16 %v175
  %v821 = vunpack.c.h.b16 %v175
  %v822 = vunpack.c.l.b16 %v176
  %v823 = vunpack.c.h.b16 %v176
  %v824 = vunpack.c.l.b16 %v177
  %v825 = vunpack.c.h.b16 %v177
  %v826 = vunpack.c.l.b16 %v178
  %v827 = vunpack.c.h.b16 %v178
  %v828 = vunpack.c.l.b16 %v179
  %v829 = vunpack.c.h.b16 %v179
  %v830 = vunpack.c.l.b16 %v180
  %v831 = vunpack.c.h.b16 %v180
  %v832 = vunpack.c.l.b16 %v181
  %v833 = vunpack.c.h.b16 %v181
  %v834 = vunpack.c.l.b16 %v182
  %v835 = vunpack.c.h.b16 %v182
  %v836 = vunpack.c.l.b16 %v183
  %v837 = vunpack.c.h.b16 %v183
  %v838 = vunpack.c.l.b16 %v184
  %v839 = vunpack.c.h.b16 %v184
  %v840 = vunpack.c.l.b16 %v185
  %v841 = vunpack.c.h.b16 %v185
  %v842 = vunpack.c.l.b16 %v186
  %v843 = vunpack.c.h.b16 %v186
  %v844 = vunpack.c.l.b16 %v187
  %v845 = vunpack.c.h.b16 %v187
  %v846 = vunpack.c.l.b16 %v188
  %v847 = vunpack.c.h.b16 %v188
  %v848 = vunpack.c.l.b16 %v189
  %v849 = vunpack.c.h.b16 %v189
  %v850 = vunpack.c.l.b16 %v190
  %v851 = vunpack.c.h.b16 %v190
  %v852 = vunpack.c.l.b16 %v191
  %v853 = vunpack.c.h.b16 %v191
  %v854 = vunpack.c.l.b16 %v192
  %v855 = vunpack.c.h.b16 %v192
  %v856 = vunpack.c.l.b16 %v193
  %v857 = vunpack.c.h.b16 %v193
  %v858 = vunpack.c.l.b16 %v194
  %v859 = vunpack.c.h.b16 %v194
  %v860 = vunpack.c.l.b16 %v195
  %v861 = vunpack.c.h.b16 %v195
  %v862 = vunpack.c.l.b16 %v196
  %v863 = vunpack.c.h.b16 %v196
  %v864 = vunpack.c.l.b16 %v197
  %v865 = vunpack.c.h.b16 %v197
  %v866 = vunpack.c.l.b16 %v198
  %v867 = vunpack.c.h.b16 %v198
  %v868 = vunpack.c.l.b16 %v199
  %v869 = vunpack.c.h.b16 %v199
  %v870 = vunpack.c.l.b16 %v200
  %v871 = vunpack.c.h.b16 %v200
  %v872 = vunpack.c.l.b16 %v201
  %v873 = vunpack.c.h.b16 %v201
  %v874 = vunpack.c.l.b16 %v202
  %v875 = vunpack.c.h.b16 %v202
  %v876 = vunpack.c.l.b16 %v203
  %v877 = vunpack.c.h.b16 %v203
  %v878 = vunpack.c.l.b16 %v204
  %v879 = vunpack.c.h.b16 %v204
  %v880 = vunpack.c.l.b16 %v205
  %v881 = vunpack.c.h.b16 %v205
  %v882 = vunpack.c.l.b16 %v206
  %v883 = vunpack.c.h.b16 %v206
  %v884 = vunpack.c.l.b16 %v207
  %v885 = vunpack.c.h.b16 %v207
  %v886 = vunpack.c.l.b16 %v208
  %v887 = vunpack.c.h.b16 %v208
  %v888 = vunpack.c.l.b16 %v209
  %v889 = vunpack.c.h.b16 %v209
  %v890 = vunpack.c.l.b16 %v210
  %v891 = vunpack.c.h.b16 %v210
  %v892 = vunpack.c.l.b16 %v211
  %v893 = vunpack.c.h.b16 %v211
  %v894 = vunpack.c.l.b16 %v212
  %v895 = vunpack.c.h.b16 %v212
  %v896 = vunpack.c.l.b16 %v213
  %v897 = vunpack.c.h.b16 %v213
  %v898 = vunpack.c.l.b16 %v214
  %v899 = vunpack.c.h.b16 %v214
  %v900 = vunpack.c.l.b16 %v215
  %v901 = vunpack.c.h.b16 %v215
  %v902 = vunpack.c.l.b16 %v216
  %v903 = vunpack.c.h.b16 %v216
  %v904 = vunpack.c.l.b16 %v217
  %v905 = vunpack.c.h.b16 %v217
  %v906 = vunpack.c.l.b16 %v218
  %v907 = vunpack.c.h.b16 %v218
  %v908 = vunpack.c.l.b16 %v219
  %v909 = vunpack.c.h.b16 %v219
  %v910 = vunpack.c.l.b16 %v220
  %v911 = vunpack.c.h.b16 %v220
  %v912 = vunpack.c.l.b16 %v221
  %v913 = vunpack.c.h.b16 %v221
  %v914 = vunpack.c.l.b16 %v222
  %v915 = vunpack.c.h.b16 %v222
  %v916 = vunpack.c.l.b16 %v223
  %v917 = vunpack.c.h.b16 %v223
  %v918 = vunpack.c.l.b16 %v224
  %v919 = vunpack.c.h.b16 %v224
  %v920 = vunpack.c.l.b16 %v225
  %v921 = vunpack.c.h.b16 %v225
  %v922 = vunpack.c.l.b16 %v226
  %v923 = vunpack.c.h.b16 %v226
  %v924 = vunpack.c.l.b16 %v227
  %v925 = vunpack.c.h.b16 %v227
  %v926 = vunpack.c.l.b16 %v228
  %v927 = vunpack.c.h.b16 %v228
  %v928 = vunpack.c.l.b16 %v229
  %v929 = vunpack.c.h.b16 %v229
  %v930 = vunpack.c.l.b16 %v230
  %v931 = vunpack.c.h.b16 %v230
  %v932 = vunpack.c.l.b16 %v231
  %v933 = vunpack.c.h.b16 %v231
  %v934 = vunpack.c.l.b16 %v232
  %v935 = vunpack.c.h.b16 %v232
  %v936 = vunpack.c.l.b16 %v233
  %v937 = vunpack.c.h.b16 %v233
  %v938 = vunpack.c.l.b16 %v234
  %v939 = vunpack.c.h.b16 %v234
  %v940 = vunpack.c.l.b16 %v235
  %v941 = vunpack.c.h.b16 %v235
  %v942 = vunpack.c.l.b16 %v236
  %v943 = vunpack.c.h.b16 %v236
  %v944 = vunpack.c.l.b16 %v237
  %v945 = vunpack.c.h.b16 %v237
  %v946 = vunpack.c.l.b16 %v238
  %v947 = vunpack.c.h.b16 %v238
  %v948 = vunpack.c.l.b16 %v239
  %v949 = vunpack.c.h.b16 %v239
  %v950 = vunpack.c.l.b16 %v240
  %v951 = vunpack.c.h.b16 %v240
  %v952 = vunpack.c.l.b16 %v241
  %v953 = vunpack.c.h.b16 %v241
  %v954 = vunpack.c.l.b16 %v242
  %v955 = vunpack.c.h.b16 %v242
  %v956 = vunpack.c.l.b16 %v243
  %v957 = vunpack.c.h.b16 %v243
  %v958 = vunpack.c.l.b16 %v244
  %v959 = vunpack.c.h.b16 %v244
  %v960 = vunpack.c.l.b16 %v245
  %v961 = vunpack.c.h.b16 %v245
  %v962 = vunpack.c.l.b16 %v246
  %v963 = vunpack.c.h.b16 %v246
  %v964 = vunpack.c.l.b16 %v247
  %v965 = vunpack.c.h.b16 %v247
  %v966 = vunpack.c.l.b16 %v248
  %v967 = vunpack.c.h.b16 %v248
  %v968 = vpack.c.b16 %v524, %v520
  %v969 = vpack.c.b16 %v525, %v521
  %v970 = vpack.c.b16 %v526, %v522
  %v971 = vpack.c.b16 %v527, %v523
  %v972 = vpack.c.b16 %v532, %v528
  %v973 = vpack.c.b16 %v533, %v529
  %v974 = vpack.c.b16 %v534, %v530
  %v975 = vpack.c.b16 %v535, %v531
  %v976 = vpack.c.b16 %v540, %v536
  %v977 = vpack.c.b16 %v541, %v537
  %v978 = vpack.c.b16 %v542, %v538
  %v979 = vpack.c.b16 %v543, %v539
  %v980 = vpack.c.b16 %v548, %v544
  %v981 = vpack.c.b16 %v549, %v545
  %v982 = vpack.c.b16 %v550, %v546
  %v983 = vpack.c.b16 %v551, %v547
  %v984 = vpack.c.b16 %v556, %v552
  %v985 = vpack.c.b16 %v557, %v553
  %v986 = vpack.c.b16 %v558, %v554
  %v987 = vpack.c.b16 %v559, %v555
  %v988 = vpack.c.b16 %v564, %v560
  %v989 = vpack.c.b16 %v565, %v561
  %v990 = vpack.c.b16 %v566, %v562
  %v991 = vpack.c.b16 %v567, %v563
  %v992 = vpack.c.b16 %v572, %v568
  %v993 = vpack.c.b16 %v573, %v569
  %v994 = vpack.c.b16 %v574, %v570
  %v995 = vpack.c.b16 %v575, %v571
  %v996 = vpack.c.b16 %v580, %v576
  %v997 = vpack.c.b16 %v581, %v577
  %v998 = vpack.c.b16 %v582, %v578
  %v999 = vpack.c.b16 %v583, %v579
  %v1000 = vpack.c.b16 %v588, %v584
  %v1001 = vpack.c.b16 %v589, %v585
  %v1002 = vpack.c.b16 %v590, %v586
  %v1003 = vpack.c.b16 %v591, %v587
  %v1004 = vpack.c.b16 %v596, %v592
  %v1005 = vpack.c.b16 %v597, %v593
  %v1006 = vpack.c.b16 %v598, %v594
  %v1007 = vpack.c.b16 %v599, %v595
  %v1008 = vpack.c.b16 %v604, %v600
  %v1009 = vpack.c.b16 %v605, %v601
  %v1010 = vpack.c.b16 %v606, %v602
  %v1011 = vpack.c.b16 %v607, %v603
  %v1012 = vpack.c.b16 %v612, %v608
  %v1013 = vpack.c.b16 %v613, %v609
  %v1014 = vpack.c.b16 %v614, %v610
  %v1015 = vpack.c.b16 %v615, %v611
  %v1016 = vpack.c.b16 %v620, %v616
  %v1017 = vpack.c.b16 %v621, %v617
  %v1018 = vpack.c.b16 %v622, %v618
  %v1019 = vpack.c.b16 %v623, %v619
  %v1020 = vpack.c.b16 %v628, %v624
  %v1021 = vpack.c.b16 %v629, %v625
  %v1022 = vpack.c.b16 %v630, %v626
  %v1023 = vpack.c.b16 %v631, %v627
  %v1024 = vpack.c.b16 %v636, %v632
  %v1025 = vpack.c.b16 %v637, %v633
  %v1026 = vpack.c.b16 %v638, %v634
  %v1027 = vpack.c.b16 %v639, %v635
  %v1028 = vpack.c.b16 %v644, %v640
  %v1029 = vpack.c.b16 %v645, %v641
  %v1030 = vpack.c.b16 %v646, %v642
  %v1031 = vpack.c.b16 %v647, %v643
  %v1032 = vpack.c.b16 %v652, %v648
  %v1033 = vpack.c.b16 %v653, %v649
  %v1034 = vpack.c.b16 %v654, %v650
  %v1035 = vpack.c.b16 %v655, %v651
  %v1036 = vpack.c.b16 %v660, %v656
  %v1037 = vpack.c.b16 %v661, %v657
  %v1038 = vpack.c.b16 %v662, %v658
  %v1039 = vpack.c.b16 %v663, %v659
  %v1040 = vpack.c.b16 %v668, %v664
  %v1041 = vpack.c.b16 %v669, %v665
  %v1042 = vpack.c.b16 %v670, %v666
  %v1043 = vpack.c.b16 %v671, %v667
  %v1044 = vpack.c.b16 %v676, %v672
  %v1045 = vpack.c.b16 %v677, %v673
  %v1046 = vpack.c.b16 %v678, %v674
  %v1047 = vpack.c.b16 %v679, %v675
  %v1048 = vpack.c.b16 %v684, %v680
  %v1049 = vpack.c.b16 %v685, %v681
  %v1050 = vpack.c.b16 %v686, %v682
  %v1051 = vpack.c.b16 %v687, %v683
  %v1052 = vpack.c.b16 %v692, %v688
  %v1053 = vpack.c.b16 %v693, %v689
  %v1054 = vpack.c.b16 %v694, %v690
  %v1055 = vpack.c.b16 %v695, %v691
  %v1056 = vpack.c.b16 %v700, %v696
  %v1057 = vpack.c.b16 %v701, %v697
  %v1058 = vpack.c.b16 %v702, %v698
  %v1059 = vpack.c.b16 %v703, %v699
  %v1060 = vpack.c.b16 %v708, %v704
  %v1061 = vpack.c.b16 %v709, %v705
  %v1062 = vpack.c.b16 %v710, %v706
  %v1063 = vpack.c.b16 %v711, %v707
  %v1064 = vpack.c.b16 %v716, %v712
  %v1065 = vpack.c.b16 %v717, %v713
  %v1066 = vpack.c.b16 %v718, %v714
  %v1067 = vpack.c.b16 %v719, %v715
  %v1068 = vpack.c.b16 %v724, %v720
  %v1069 = vpack.c.b16 %v725, %v721
  %v1070 = vpack.c.b16 %v726, %v722
  %v1071 = vpack.c.b16 %v727, %v723
  %v1072 = vpack.c.b16 %v732, %v728
  %v1073 = vpack.c.b16 %v733, %v729
  %v1074 = vpack.c.b16 %v734, %v730
  %v1075 = vpack.c.b16 %v735, %v731
  %v1076 = vpack.c.b16 %v740, %v736
  %v1077 = vpack.c.b16 %v741, %v737
  %v1078 = vpack.c.b16 %v742, %v738
  %v1079 = vpack.c.b16 %v743, %v739
  %v1080 = vpack.c.b16 %v748, %v744
  %v1081 = vpack.c.b16 %v749, %v745
  %v1082 = vpack.c.b16 %v750, %v746
  %v1083 = vpack.c.b16 %v751, %v747
  %v1084 = vpack.c.b16 %v756, %v752
  %v1085 = vpack.c.b16 %v757, %v753
  %v1086 = vpack.c.b16 %v758, %v754
  %v1087 = vpack.c.b16 %v759, %v755
  %v1088 = vpack.c.b16 %v764, %v760
  %v1089 = vpack.c.b16 %v765, %v761
  %v1090 = vpack.c.b16 %v766, %v762
  %v1091 = vpack.c.b16 %v767, %v763
  %v1092 = vpack.c.b16 %v772, %v768
  %v1093 = vpack.c.b16 %v773, %v769
  %v1094 = vpack.c.b16 %v774, %v770
  %v1095 = vpack.c.b16 %v775, %v771
  %v1096 = vpack.c.b16 %v780, %v776
  %v1097 = vpack.c.b16 %v781, %v777
  %v1098 = vpack.c.b16 %v782, %v778
  %v1099 = vpack.c.b16 %v783, %v779
  %v1100 = vpack.c.b16 %v788, %v784
  %v1101 = vpack.c.b16 %v789, %v785
  %v1102 = vpack.c.b16 %v790, %v786
  %v1103 = vpack.c.b16 %v791, %v787
  %v1104 = vpack.c.b16 %v796, %v792
  %v1105 = vpack.c.b16 %v797, %v793
  %v1106 = vpack.c.b16 %v798, %v794
  %v1107 = vpack.c.b16 %v799, %v795
  %v1108 = vpack.c.b16 %v804, %v800
  %v1109 = vpack.c.b16 %v805, %v801
  %v1110 = vpack.c.b16 %v806, %v802
  %v1111 = vpack.c.b16 %v807, %v803
  %v1112 = vpack.c.b16 %v812, %v808
  %v1113 = vpack.c.b16 %v813, %v809
  %v1114 = vpack.c.b16 %v814, %v810
  %v1115 = vpack.c.b16 %v815, %v811
  %v1116 = vpack.c.b16 %v820, %v816
  %v1117 = vpack.c.b16 %v821, %v817
  %v1118 = vpack.c.b16 %v822, %v818
  %v1119 = vpack.c.b16 %v823, %v819
  %v1120 = vpack.c.b16 %v828, %v824
  %v1121 = vpack.c.b16 %v829, %v825
  %v1122 = vpack.c.b16 %v830, %v826
  %v1123 = vpack.c.b16 %v831, %v827
  %v1124 = vpack.c.b16 %v836, %v832
  %v1125 = vpack.c.b16 %v837, %v833
  %v1126 = vpack.c.b16 %v838, %v834
  %v1127 = vpack.c.b16 %v839, %v835
  %v1128 = vpack.c.b16 %v844, %v840
  %v1129 = vpack.c.b16 %v845, %v841
  %v1130 = vpack.c.b16 %v846, %v842
  %v1131 = vpack.c.b16 %v847, %v843
  %v1132 = vpack.c.b16 %v852, %v848
  %v1133 = vpack.c.b16 %v853, %v849
  %v1134 = vpack.c.b16 %v854, %v850
  %v1135 = vpack.c.b16 %v855, %v851
  %v1136 = vpack.c.b16 %v860, %v856
  %v1137 = vpack.c.b16 %v861, %v857
  %v1138 = vpack.c.b16 %v862, %v858
  %v1139 = vpack.c.b16 %v863, %v859
  %v1140 = vpack.c.b16 %v868, %v864
  %v1141 = vpack.c.b16 %v869, %v865
  %v1142 = vpack.c.b16 %v870, %v866
  %v1143 = vpack.c.b16 %v871, %v867
  %v1144 = vpack.c.b16 %v876, %v872
  %v1145 = vpack.c.b16 %v877, %v873
  %v1146 = vpack.c.b16 %v878, %v874
  %v1147 = vpack.c.b16 %v879, %v875
  %v1148 = vpack.c.b16 %v884, %v880
  %v1149 = vpack.c.b16 %v885, %v881
  %v1150 = vpack.c.b16 %v886, %v882
  %v1151 = vpack.c.b16 %v887, %v883
  %v1152 = vpack.c.b16 %v892, %v888
  %v1153 = vpack.c.b16 %v893, %v889
  %v1154 = vpack.c.b16 %v894, %v890
  %v1155 = vpack.c.b16 %v895, %v891
  %v1156 = vpack.c.b16 %v900, %v896
  %v1157 = vpack.c.b16 %v901, %v897
  %v1158 = vpack.c.b16 %v902, %v898
  %v1159 = vpack.c.b16 %v903, %v899
  %v1160 = vpack.c.b16 %v908, %v904
  %v1161 = vpack.c.b16 %v909, %v905
  %v1162 = vpack.c.b16 %v910, %v906
  %v1163 = vpack.c.b16 %v911, %v907
  %v1164 = vpack.c.b16 %v916, %v912
  %v1165 = vpack.c.b16 %v917, %v913
  %v1166 = vpack.c.b16 %v918, %v914
  %v1167 = vpack.c.b16 %v919, %v915
  %v1168 = vpack.c.b16 %v924, %v920
  %v1169 = vpack.c.b16 %v925, %v921
  %v1170 = vpack.c.b16 %v926, %v922
  %v1171 = vpack.c.b16 %v927, %v923
  %v1172 = vpack.c.b16 %v932, %v928
  %v1173 = vpack.c.b16 %v933, %v929
  %v1174 = vpack.c.b16 %v934, %v930
  %v1175 = vpack.c.b16 %v935, %v931
  %v1176 = vpack.c.b16 %v940, %v936
  %v1177 = vpack.c.b16 %v941, %v937
  %v1178 = vpack.c.b16 %v942, %v938
  %v1179 = vpack.c.b16 %v943, %v939
  %v1180 = vpack.c.b16 %v948, %v944
  %v1181 = vpack.c.b16 %v949, %v945
  %v1182 = vpack.c.b16 %v950, %v946
  %v1183 = vpack.c.b16 %v951, %v947
  %v1184 = vpack.c.b16 %v956, %v952
  %v1185 = vpack.c.b16 %v957, %v953
  %v1186 = vpack.c.b16 %v958, %v954
  %v1187 = vpack.c.b16 %v959, %v955
  %v1188 = vpack.c.b16 %v964, %v960
  %v1189 = vpack.c.b16 %v965, %v961
  %v1190 = vpack.c.b16 %v966, %v962
  %v1191 = vpack.c.b16 %v967, %v963
  %1416 = vmatprep.subr.bf16.mxu0 %v969
  %1417 = vmatpush1.bf16.msra.mxu0 %v968
  %1418 = vmatprep.subr.bf16.mxu0 %v973
  %1419 = vmatpush1.bf16.msra.mxu0 %v972
  %1420 = vmatprep.subr.bf16.mxu0 %v977
  %1421 = vmatpush1.bf16.msra.mxu0 %v976
  %1422 = vmatprep.subr.bf16.mxu0 %v981
  %1423 = vmatpush1.bf16.msra.mxu0 %v980
  %1424 = vmatprep.subr.bf16.mxu0 %v985
  %1425 = vmatpush1.bf16.msra.mxu0 %v984
  %1426 = vmatprep.subr.bf16.mxu0 %v989
  %1427 = vmatpush1.bf16.msra.mxu0 %v988
  %1428 = vmatprep.subr.bf16.mxu0 %v993
  %1429 = vmatpush1.bf16.msra.mxu0 %v992
  %1430 = vmatprep.subr.bf16.mxu0 %v997
  %1431 = vmatpush1.bf16.msra.mxu0 %v996
  %1432 = vmatprep.subr.bf16.mxu0 %v1001
  %1433 = vmatpush1.bf16.msra.mxu0 %v1000
  %1434 = vmatprep.subr.bf16.mxu0 %v1005
  %1435 = vmatpush1.bf16.msra.mxu0 %v1004
  %1436 = vmatprep.subr.bf16.mxu0 %v1009
  %1437 = vmatpush1.bf16.msra.mxu0 %v1008
  %1438 = vmatprep.subr.bf16.mxu0 %v1013
  %1439 = vmatpush1.bf16.msra.mxu0 %v1012
  %1440 = vmatprep.subr.bf16.mxu0 %v1017
  %1441 = vmatpush1.bf16.msra.mxu0 %v1016
  %1442 = vmatprep.subr.bf16.mxu0 %v1021
  %1443 = vmatpush1.bf16.msra.mxu0 %v1020
  %1444 = vmatprep.subr.bf16.mxu0 %v1025
  %1445 = vmatpush1.bf16.msra.mxu0 %v1024
  %1446 = vmatprep.subr.bf16.mxu0 %v1029
  %1447 = vmatpush1.bf16.msra.mxu0 %v1028
  %1448 = vmatprep.mubr.bf16.mxu0 %v283
  %1449 = vmatmul.mubr.bf16.gmra.mrb[0].mxu0 %v282
  %v1450 = vpop.f32.mrb[0].mxu0
  %v1451 = vadd.f32 %v254, %v1450
  %v1452 = vpop.f32.mrb[0].mxu0
  %v1453 = vadd.f32 %v258, %v1452
  %v1454 = vpop.f32.mrb[0].mxu0
  %v1455 = vpop.f32.mrb[0].mxu0
  %1456 = vdwg.mxu0
  %1457 = vmatprep.subr.bf16.mxu0 %v1033
  %1458 = vmatpush1.bf16.msra.mxu0 %v1032
  %1459 = vmatprep.subr.bf16.mxu0 %v1037
  %1460 = vmatpush1.bf16.msra.mxu0 %v1036
  %1461 = vmatprep.subr.bf16.mxu0 %v1041
  %1462 = vmatpush1.bf16.msra.mxu0 %v1040
  %1463 = vmatprep.subr.bf16.mxu0 %v1045
  %1464 = vmatpush1.bf16.msra.mxu0 %v1044
  %1465 = vmatprep.subr.bf16.mxu0 %v1049
  %1466 = vmatpush1.bf16.msra.mxu0 %v1048
  %1467 = vmatprep.subr.bf16.mxu0 %v1053
  %1468 = vmatpush1.bf16.msra.mxu0 %v1052
  %1469 = vmatprep.subr.bf16.mxu0 %v1057
  %1470 = vmatpush1.bf16.msra.mxu0 %v1056
  %1471 = vmatprep.subr.bf16.mxu0 %v1061
  %1472 = vmatpush1.bf16.msra.mxu0 %v1060
  %1473 = vmatprep.subr.bf16.mxu0 %v1065
  %1474 = vmatpush1.bf16.msra.mxu0 %v1064
  %1475 = vmatprep.subr.bf16.mxu0 %v1069
  %1476 = vmatpush1.bf16.msra.mxu0 %v1068
  %1477 = vmatprep.subr.bf16.mxu0 %v1073
  %1478 = vmatpush1.bf16.msra.mxu0 %v1072
  %1479 = vmatprep.subr.bf16.mxu0 %v1077
  %1480 = vmatpush1.bf16.msra.mxu0 %v1076
  %1481 = vmatprep.subr.bf16.mxu0 %v1081
  %1482 = vmatpush1.bf16.msra.mxu0 %v1080
  %1483 = vmatprep.subr.bf16.mxu0 %v1085
  %1484 = vmatpush1.bf16.msra.mxu0 %v1084
  %1485 = vmatprep.subr.bf16.mxu0 %v1089
  %1486 = vmatpush1.bf16.msra.mxu0 %v1088
  %1487 = vmatprep.subr.bf16.mxu0 %v1093
  %1488 = vmatpush1.bf16.msra.mxu0 %v1092
  %1489 = vmatprep.mubr.bf16.mxu0 %v285
  %1490 = vmatmul.mubr.bf16.gmra.mrb[0].mxu0 %v284
  %v1491 = vpop.f32.mrb[0].mxu0
  %v1492 = vadd.f32 %v1451, %v1491
  %v1493 = vpop.f32.mrb[0].mxu0
  %v1494 = vadd.f32 %v1453, %v1493
  %v1495 = vpop.f32.mrb[0].mxu0
  %v1496 = vpop.f32.mrb[0].mxu0
  %1497 = vdwg.mxu0
  %1498 = vmatprep.subr.bf16.mxu0 %v1097
  %1499 = vmatpush1.bf16.msra.mxu0 %v1096
  %1500 = vmatprep.subr.bf16.mxu0 %v1101
  %1501 = vmatpush1.bf16.msra.mxu0 %v1100
  %1502 = vmatprep.subr.bf16.mxu0 %v1105
  %1503 = vmatpush1.bf16.msra.mxu0 %v1104
  %1504 = vmatprep.subr.bf16.mxu0 %v1109
  %1505 = vmatpush1.bf16.msra.mxu0 %v1108
  %1506 = vmatprep.subr.bf16.mxu0 %v1113
  %1507 = vmatpush1.bf16.msra.mxu0 %v1112
  %1508 = vmatprep.subr.bf16.mxu0 %v1117
  %1509 = vmatpush1.bf16.msra.mxu0 %v1116
  %1510 = vmatprep.subr.bf16.mxu0 %v1121
  %1511 = vmatpush1.bf16.msra.mxu0 %v1120
  %1512 = vmatprep.subr.bf16.mxu0 %v1125
  %1513 = vmatpush1.bf16.msra.mxu0 %v1124
  %1514 = vmatprep.subr.bf16.mxu0 %v1129
  %1515 = vmatpush1.bf16.msra.mxu0 %v1128
  %1516 = vmatprep.subr.bf16.mxu0 %v1133
  %1517 = vmatpush1.bf16.msra.mxu0 %v1132
  %1518 = vmatprep.subr.bf16.mxu0 %v1137
  %1519 = vmatpush1.bf16.msra.mxu0 %v1136
  %1520 = vmatprep.subr.bf16.mxu0 %v1141
  %1521 = vmatpush1.bf16.msra.mxu0 %v1140
  %1522 = vmatprep.subr.bf16.mxu0 %v1145
  %1523 = vmatpush1.bf16.msra.mxu0 %v1144
  %1524 = vmatprep.subr.bf16.mxu0 %v1149
  %1525 = vmatpush1.bf16.msra.mxu0 %v1148
  %1526 = vmatprep.subr.bf16.mxu0 %v1153
  %1527 = vmatpush1.bf16.msra.mxu0 %v1152
  %1528 = vmatprep.subr.bf16.mxu0 %v1157
  %1529 = vmatpush1.bf16.msra.mxu0 %v1156
  %1530 = vmatprep.mubr.bf16.mxu0 %v287
  %1531 = vmatmul.mubr.bf16.gmra.mrb[0].mxu0 %v286
  %v1532 = vpop.f32.mrb[0].mxu0
  %v1533 = vadd.f32 %v1492, %v1532
  %v1534 = vpop.f32.mrb[0].mxu0
  %v1535 = vadd.f32 %v1494, %v1534
  %v1536 = vpop.f32.mrb[0].mxu0
  %v1537 = vpop.f32.mrb[0].mxu0
  %1538 = vdwg.mxu0
  %1539 = vmatprep.subr.bf16.mxu0 %v1161
  %1540 = vmatpush1.bf16.msra.mxu0 %v1160
  %1541 = vmatprep.subr.bf16.mxu0 %v1165
  %1542 = vmatpush1.bf16.msra.mxu0 %v1164
  %1543 = vmatprep.subr.bf16.mxu0 %v1169
  %1544 = vmatpush1.bf16.msra.mxu0 %v1168
  %1545 = vmatprep.subr.bf16.mxu0 %v1173
  %1546 = vmatpush1.bf16.msra.mxu0 %v1172
  %1547 = vmatprep.subr.bf16.mxu0 %v1177
  %1548 = vmatpush1.bf16.msra.mxu0 %v1176
  %1549 = vmatprep.subr.bf16.mxu0 %v1181
  %1550 = vmatpush1.bf16.msra.mxu0 %v1180
  %1551 = vmatprep.subr.bf16.mxu0 %v1185
  %1552 = vmatpush1.bf16.msra.mxu0 %v1184
  %1553 = vmatprep.subr.bf16.mxu0 %v1189
  %1554 = vmatpush1.bf16.msra.mxu0 %v1188
  %1555 = vmatprep.subr.bf16.mxu0 0
  %1556 = vmatpush1.bf16.msra.mxu0 0
  %1557 = vmatprep.subr.bf16.mxu0 0
  %1558 = vmatpush1.bf16.msra.mxu0 0
  %1559 = vmatprep.subr.bf16.mxu0 0
  %1560 = vmatpush1.bf16.msra.mxu0 0
  %1561 = vmatprep.subr.bf16.mxu0 0
  %1562 = vmatpush1.bf16.msra.mxu0 0
  %1563 = vmatprep.subr.bf16.mxu0 0
  %1564 = vmatpush1.bf16.msra.mxu0 0
  %1565 = vmatprep.subr.bf16.mxu0 0
  %1566 = vmatpush1.bf16.msra.mxu0 0
  %1567 = vmatprep.subr.bf16.mxu0 0
  %1568 = vmatpush1.bf16.msra.mxu0 0
  %1569 = vmatprep.subr.bf16.mxu0 0
  %1570 = vmatpush1.bf16.msra.mxu0 0
  %1571 = vmatprep.mubr.bf16.mxu0 0
  %1572 = vmatmul.mubr.bf16.gmra.mrb[0].mxu0 %v288
  %v1573 = vpop.f32.mrb[0].mxu0
  %v1574 = vadd.f32 %v1533, %v1573
  %v1575 = vpop.f32.mrb[0].mxu0
  %v1576 = vadd.f32 %v1535, %v1575
  %v1577 = vpop.f32.mrb[0].mxu0
  %v1578 = vpop.f32.mrb[0].mxu0
  %1579 = vdwg.mxu0
  %1580 = vmatprep.subr.bf16.mxu0 %v971
  %1581 = vmatpush1.bf16.msra.mxu0 %v970
  %1582 = vmatprep.subr.bf16.mxu0 %v975
  %1583 = vmatpush1.bf16.msra.mxu0 %v974
  %1584 = vmatprep.subr.bf16.mxu0 %v979
  %1585 = vmatpush1.bf16.msra.mxu0 %v978
  %1586 = vmatprep.subr.bf16.mxu0 %v983
  %1587 = vmatpush1.bf16.msra.mxu0 %v982
  %1588 = vmatprep.subr.bf16.mxu0 %v987
  %1589 = vmatpush1.bf16.msra.mxu0 %v986
  %1590 = vmatprep.subr.bf16.mxu0 %v991
  %1591 = vmatpush1.bf16.msra.mxu0 %v990
  %1592 = vmatprep.subr.bf16.mxu0 %v995
  %1593 = vmatpush1.bf16.msra.mxu0 %v994
  %1594 = vmatprep.subr.bf16.mxu0 %v999
  %1595 = vmatpush1.bf16.msra.mxu0 %v998
  %1596 = vmatprep.subr.bf16.mxu0 %v1003
  %1597 = vmatpush1.bf16.msra.mxu0 %v1002
  %1598 = vmatprep.subr.bf16.mxu0 %v1007
  %1599 = vmatpush1.bf16.msra.mxu0 %v1006
  %1600 = vmatprep.subr.bf16.mxu0 %v1011
  %1601 = vmatpush1.bf16.msra.mxu0 %v1010
  %1602 = vmatprep.subr.bf16.mxu0 %v1015
  %1603 = vmatpush1.bf16.msra.mxu0 %v1014
  %1604 = vmatprep.subr.bf16.mxu0 %v1019
  %1605 = vmatpush1.bf16.msra.mxu0 %v1018
  %1606 = vmatprep.subr.bf16.mxu0 %v1023
  %1607 = vmatpush1.bf16.msra.mxu0 %v1022
  %1608 = vmatprep.subr.bf16.mxu0 %v1027
  %1609 = vmatpush1.bf16.msra.mxu0 %v1026
  %1610 = vmatprep.subr.bf16.mxu0 %v1031
  %1611 = vmatpush1.bf16.msra.mxu0 %v1030
  %1612 = vmatprep.mubr.bf16.mxu0 %v283
  %1613 = vmatmul.mubr.bf16.gmra.mrb[0].mxu0 %v282
  %v1614 = vpop.f32.mrb[0].mxu0
  %v1615 = vadd.f32 %v262, %v1614
  %v1616 = vpop.f32.mrb[0].mxu0
  %v1617 = vadd.f32 %v266, %v1616
  %v1618 = vpop.f32.mrb[0].mxu0
  %v1619 = vpop.f32.mrb[0].mxu0
  %1620 = vdwg.mxu0
  %1621 = vmatprep.subr.bf16.mxu0 %v1035
  %1622 = vmatpush1.bf16.msra.mxu0 %v1034
  %1623 = vmatprep.subr.bf16.mxu0 %v1039
  %1624 = vmatpush1.bf16.msra.mxu0 %v1038
  %1625 = vmatprep.subr.bf16.mxu0 %v1043
  %1626 = vmatpush1.bf16.msra.mxu0 %v1042
  %1627 = vmatprep.subr.bf16.mxu0 %v1047
  %1628 = vmatpush1.bf16.msra.mxu0 %v1046
  %1629 = vmatprep.subr.bf16.mxu0 %v1051
  %1630 = vmatpush1.bf16.msra.mxu0 %v1050
  %1631 = vmatprep.subr.bf16.mxu0 %v1055
  %1632 = vmatpush1.bf16.msra.mxu0 %v1054
  %1633 = vmatprep.subr.bf16.mxu0 %v1059
  %1634 = vmatpush1.bf16.msra.mxu0 %v1058
  %1635 = vmatprep.subr.bf16.mxu0 %v1063
  %1636 = vmatpush1.bf16.msra.mxu0 %v1062
  %1637 = vmatprep.subr.bf16.mxu0 %v1067
  %1638 = vmatpush1.bf16.msra.mxu0 %v1066
  %1639 = vmatprep.subr.bf16.mxu0 %v1071
  %1640 = vmatpush1.bf16.msra.mxu0 %v1070
  %1641 = vmatprep.subr.bf16.mxu0 %v1075
  %1642 = vmatpush1.bf16.msra.mxu0 %v1074
  %1643 = vmatprep.subr.bf16.mxu0 %v1079
  %1644 = vmatpush1.bf16.msra.mxu0 %v1078
  %1645 = vmatprep.subr.bf16.mxu0 %v1083
  %1646 = vmatpush1.bf16.msra.mxu0 %v1082
  %1647 = vmatprep.subr.bf16.mxu0 %v1087
  %1648 = vmatpush1.bf16.msra.mxu0 %v1086
  %1649 = vmatprep.subr.bf16.mxu0 %v1091
  %1650 = vmatpush1.bf16.msra.mxu0 %v1090
  %1651 = vmatprep.subr.bf16.mxu0 %v1095
  %1652 = vmatpush1.bf16.msra.mxu0 %v1094
  %1653 = vmatprep.mubr.bf16.mxu0 %v285
  %1654 = vmatmul.mubr.bf16.gmra.mrb[0].mxu0 %v284
  %v1655 = vpop.f32.mrb[0].mxu0
  %v1656 = vadd.f32 %v1615, %v1655
  %v1657 = vpop.f32.mrb[0].mxu0
  %v1658 = vadd.f32 %v1617, %v1657
  %v1659 = vpop.f32.mrb[0].mxu0
  %v1660 = vpop.f32.mrb[0].mxu0
  %1661 = vdwg.mxu0
  %1662 = vmatprep.subr.bf16.mxu0 %v1099
  %1663 = vmatpush1.bf16.msra.mxu0 %v1098
  %1664 = vmatprep.subr.bf16.mxu0 %v1103
  %1665 = vmatpush1.bf16.msra.mxu0 %v1102
  %1666 = vmatprep.subr.bf16.mxu0 %v1107
  %1667 = vmatpush1.bf16.msra.mxu0 %v1106
  %1668 = vmatprep.subr.bf16.mxu0 %v1111
  %1669 = vmatpush1.bf16.msra.mxu0 %v1110
  %1670 = vmatprep.subr.bf16.mxu0 %v1115
  %1671 = vmatpush1.bf16.msra.mxu0 %v1114
  %1672 = vmatprep.subr.bf16.mxu0 %v1119
  %1673 = vmatpush1.bf16.msra.mxu0 %v1118
  %1674 = vmatprep.subr.bf16.mxu0 %v1123
  %1675 = vmatpush1.bf16.msra.mxu0 %v1122
  %1676 = vmatprep.subr.bf16.mxu0 %v1127
  %1677 = vmatpush1.bf16.msra.mxu0 %v1126
  %1678 = vmatprep.subr.bf16.mxu0 %v1131
  %1679 = vmatpush1.bf16.msra.mxu0 %v1130
  %1680 = vmatprep.subr.bf16.mxu0 %v1135
  %1681 = vmatpush1.bf16.msra.mxu0 %v1134
  %1682 = vmatprep.subr.bf16.mxu0 %v1139
  %1683 = vmatpush1.bf16.msra.mxu0 %v1138
  %1684 = vmatprep.subr.bf16.mxu0 %v1143
  %1685 = vmatpush1.bf16.msra.mxu0 %v1142
  %1686 = vmatprep.subr.bf16.mxu0 %v1147
  %1687 = vmatpush1.bf16.msra.mxu0 %v1146
  %1688 = vmatprep.subr.bf16.mxu0 %v1151
  %1689 = vmatpush1.bf16.msra.mxu0 %v1150
  %1690 = vmatprep.subr.bf16.mxu0 %v1155
  %1691 = vmatpush1.bf16.msra.mxu0 %v1154
  %1692 = vmatprep.subr.bf16.mxu0 %v1159
  %1693 = vmatpush1.bf16.msra.mxu0 %v1158
  %1694 = vmatprep.mubr.bf16.mxu0 %v287
  %1695 = vmatmul.mubr.bf16.gmra.mrb[0].mxu0 %v286
  %v1696 = vpop.f32.mrb[0].mxu0
  %v1697 = vadd.f32 %v1656, %v1696
  %v1698 = vpop.f32.mrb[0].mxu0
  %v1699 = vadd.f32 %v1658, %v1698
  %v1700 = vpop.f32.mrb[0].mxu0
  %v1701 = vpop.f32.mrb[0].mxu0
  %1702 = vdwg.mxu0
  %1703 = vmatprep.subr.bf16.mxu0 %v1163
  %1704 = vmatpush1.bf16.msra.mxu0 %v1162
  %1705 = vmatprep.subr.bf16.mxu0 %v1167
  %1706 = vmatpush1.bf16.msra.mxu0 %v1166
  %1707 = vmatprep.subr.bf16.mxu0 %v1171
  %1708 = vmatpush1.bf16.msra.mxu0 %v1170
  %1709 = vmatprep.subr.bf16.mxu0 %v1175
  %1710 = vmatpush1.bf16.msra.mxu0 %v1174
  %1711 = vmatprep.subr.bf16.mxu0 %v1179
  %1712 = vmatpush1.bf16.msra.mxu0 %v1178
  %1713 = vmatprep.subr.bf16.mxu0 %v1183
  %1714 = vmatpush1.bf16.msra.mxu0 %v1182
  %1715 = vmatprep.subr.bf16.mxu0 %v1187
  %1716 = vmatpush1.bf16.msra.mxu0 %v1186
  %1717 = vmatprep.subr.bf16.mxu0 %v1191
  %1718 = vmatpush1.bf16.msra.mxu0 %v1190
  %1719 = vmatprep.subr.bf16.mxu0 0
  %1720 = vmatpush1.bf16.msra.mxu0 0
  %1721 = vmatprep.subr.bf16.mxu0 0
  %1722 = vmatpush1.bf16.msra.mxu0 0
  %1723 = vmatprep.subr.bf16.mxu0 0
  %1724 = vmatpush1.bf16.msra.mxu0 0
  %1725 = vmatprep.subr.bf16.mxu0 0
  %1726 = vmatpush1.bf16.msra.mxu0 0
  %1727 = vmatprep.subr.bf16.mxu0 0
  %1728 = vmatpush1.bf16.msra.mxu0 0
  %1729 = vmatprep.subr.bf16.mxu0 0
  %1730 = vmatpush1.bf16.msra.mxu0 0
  %1731 = vmatprep.subr.bf16.mxu0 0
  %1732 = vmatpush1.bf16.msra.mxu0 0
  %1733 = vmatprep.subr.bf16.mxu0 0
  %1734 = vmatpush1.bf16.msra.mxu0 0
  %1735 = vmatprep.mubr.bf16.mxu0 0
  %1736 = vmatmul.mubr.bf16.gmra.mrb[0].mxu0 %v288
  %v1737 = vpop.f32.mrb[0].mxu0
  %v1738 = vadd.f32 %v1697, %v1737
  %v1739 = vpop.f32.mrb[0].mxu0
  %v1740 = vadd.f32 %v1699, %v1739
  %v1741 = vpop.f32.mrb[0].mxu0
  %v1742 = vpop.f32.mrb[0].mxu0
  %1743 = vdwg.mxu0
  %v1744 = vmax.f32 %v1574, 0.0
  %v1745 = vmax.f32 %v1576, 0.0
  %v1746 = vmax.f32 %v1738, 0.0
  %v1747 = vmax.f32 %v1740, 0.0
  %v1748 = vpack.c.bf16 %v1744, %v1744
  %v1749 = vpack.c.bf16 %v1745, %v1745
  %v1750 = vpack.c.bf16 %v1746, %v1746
  %v1751 = vpack.c.bf16 %v1747, %v1747
  %v1752 = vld [vmem:[%s3] sm:$0xf]
  %v1753 = vld [vmem:[%s3 + $0x4] sm:$0xf]
  %v1754 = vld [vmem:[%s3 + $0x8] sm:$0xf]
  %v1755 = vld [vmem:[%s3 + $0xc] sm:$0xf]
  %v1756 = vld [vmem:[%s3 + $0x10] sm:$0xf]
  %v1757 = vld [vmem:[%s3 + $0x14] sm:$0xf]
  %v1758 = vld [vmem:[%s3 + $0x18] sm:$0xf]
  %v1759 = vld [vmem:[%s3 + $0x1c] sm:$0xf]
  %v1760 = vld [vmem:[%s3 + $0x20] sm:$0xf]
  %v1761 = vld [vmem:[%s3 + $0x24] sm:$0xf]
  %v1762 = vld [vmem:[%s3 + $0x28] sm:$0xf]
  %v1763 = vld [vmem:[%s3 + $0x2c] sm:$0xf]
  %v1764 = vld [vmem:[%s3 + $0x30] sm:$0xf]
  %v1765 = vld [vmem:[%s3 + $0x34] sm:$0xf]
  %v1766 = vld [vmem:[%s3 + $0x38] sm:$0xf]
  %v1767 = vld [vmem:[%s3 + $0x3c] sm:$0xf]
  %v1768 = vld [vmem:[%s3 + $0x40] sm:$0xf]
  %v1769 = vld [vmem:[%s3 + $0x44] sm:$0xf]
  %v1770 = vld [vmem:[%s3 + $0x48] sm:$0xf]
  %v1771 = vld [vmem:[%s3 + $0x4c] sm:$0xf]
  %v1772 = vld [vmem:[%s3 + $0x50] sm:$0xf]
  %v1773 = vld [vmem:[%s3 + $0x54] sm:$0xf]
  %v1774 = vld [vmem:[%s3 + $0x58] sm:$0xf]
  %v1775 = vld [vmem:[%s3 + $0x5c] sm:$0xf]
  %v1776 = vld [vmem:[%s3 + $0x60] sm:$0xf]
  %v1777 = vld [vmem:[%s3 + $0x64] sm:$0xf]
  %v1778 = vld [vmem:[%s3 + $0x68] sm:$0xf]
  %v1779 = vld [vmem:[%s3 + $0x6c] sm:$0xf]
  %v1780 = vld [vmem:[%s3 + $0x70] sm:$0xf]
  %v1781 = vld [vmem:[%s3 + $0x74] sm:$0xf]
  %v1782 = vld [vmem:[%s3 + $0x78] sm:$0xf]
  %v1783 = vld [vmem:[%s3 + $0x7c] sm:$0xf]
  %v1784 = vld [vmem:[%s3 + $0x80] sm:$0xf]
  %v1785 = vld [vmem:[%s3 + $0x84] sm:$0xf]
  %v1786 = vld [vmem:[%s3 + $0x88] sm:$0xf]
  %v1787 = vld [vmem:[%s3 + $0x8c] sm:$0xf]
  %v1788 = vld [vmem:[%s3 + $0x90] sm:$0xf]
  %v1789 = vld [vmem:[%s3 + $0x94] sm:$0xf]
  %v1790 = vld [vmem:[%s3 + $0x98] sm:$0xf]
  %v1791 = vld [vmem:[%s3 + $0x9c] sm:$0xf]
  %v1792 = vld [vmem:[%s3 + $0xa0] sm:$0xf]
  %v1793 = vld [vmem:[%s3 + $0xa4] sm:$0xf]
  %v1794 = vld [vmem:[%s3 + $0xa8] sm:$0xf]
  %v1795 = vld [vmem:[%s3 + $0xac] sm:$0xf]
  %v1796 = vld [vmem:[%s3 + $0xb0] sm:$0xf]
  %v1797 = vld [vmem:[%s3 + $0xb4] sm:$0xf]
  %v1798 = vld [vmem:[%s3 + $0xb8] sm:$0xf]
  %v1799 = vld [vmem:[%s3 + $0xbc] sm:$0xf]
  %v1800 = vld [vmem:[%s3 + $0xc0] sm:$0xf]
  %v1801 = vld [vmem:[%s3 + $0xc4] sm:$0xf]
  %v1802 = vld [vmem:[%s3 + $0xc8] sm:$0xf]
  %v1803 = vld [vmem:[%s3 + $0xcc] sm:$0xf]
  %v1804 = vld [vmem:[%s3 + $0xd0] sm:$0xf]
  %v1805 = vld [vmem:[%s3 + $0xd4] sm:$0xf]
  %v1806 = vld [vmem:[%s3 + $0xd8] sm:$0xf]
  %v1807 = vld [vmem:[%s3 + $0xdc] sm:$0xf]
  %v1808 = vld [vmem:[%s3 + $0xe0] sm:$0xf]
  %v1809 = vld [vmem:[%s3 + $0xe4] sm:$0xf]
  %v1810 = vld [vmem:[%s3 + $0xe8] sm:$0xf]
  %v1811 = vld [vmem:[%s3 + $0xec] sm:$0xf]
  %v1812 = vld [vmem:[%s3 + $0xf0] sm:$0xf]
  %v1813 = vld [vmem:[%s3 + $0xf4] sm:$0xf]
  %v1814 = vld [vmem:[%s3 + $0xf8] sm:$0xf]
  %v1815 = vld [vmem:[%s3 + $0xfc] sm:$0xf]
  %v1816 = vld [vmem:[%s4] sm:$0x1]
  %v1818 = vlaneseq
  %v1819 = vshrl.u32 %v1818, 7
  %v1820 = vsub.s32 0, %v1819
  %v1821 = vrot.slane %v1816, %v1820
  %v1887 = vunpack.c.l.b16 %v1752
  %v1888 = vunpack.c.l.b16 %v1753
  %v1889 = vunpack.c.l.b16 %v1754
  %v1890 = vunpack.c.l.b16 %v1755
  %v1891 = vunpack.c.l.b16 %v1756
  %v1892 = vunpack.c.l.b16 %v1757
  %v1893 = vunpack.c.l.b16 %v1758
  %v1894 = vunpack.c.l.b16 %v1759
  %v1895 = vunpack.c.l.b16 %v1760
  %v1896 = vunpack.c.l.b16 %v1761
  %v1897 = vunpack.c.l.b16 %v1762
  %v1898 = vunpack.c.l.b16 %v1763
  %v1899 = vunpack.c.l.b16 %v1764
  %v1900 = vunpack.c.l.b16 %v1765
  %v1901 = vunpack.c.l.b16 %v1766
  %v1902 = vunpack.c.l.b16 %v1767
  %v1903 = vunpack.c.l.b16 %v1768
  %v1904 = vunpack.c.l.b16 %v1769
  %v1905 = vunpack.c.l.b16 %v1770
  %v1906 = vunpack.c.l.b16 %v1771
  %v1907 = vunpack.c.l.b16 %v1772
  %v1908 = vunpack.c.l.b16 %v1773
  %v1909 = vunpack.c.l.b16 %v1774
  %v1910 = vunpack.c.l.b16 %v1775
  %v1911 = vunpack.c.l.b16 %v1776
  %v1912 = vunpack.c.l.b16 %v1777
  %v1913 = vunpack.c.l.b16 %v1778
  %v1914 = vunpack.c.l.b16 %v1779
  %v1915 = vunpack.c.l.b16 %v1780
  %v1916 = vunpack.c.l.b16 %v1781
  %v1917 = vunpack.c.l.b16 %v1782
  %v1918 = vunpack.c.l.b16 %v1783
  %v1919 = vunpack.c.l.b16 %v1784
  %v1920 = vunpack.c.l.b16 %v1785
  %v1921 = vunpack.c.l.b16 %v1786
  %v1922 = vunpack.c.l.b16 %v1787
  %v1923 = vunpack.c.l.b16 %v1788
  %v1924 = vunpack.c.l.b16 %v1789
  %v1925 = vunpack.c.l.b16 %v1790
  %v1926 = vunpack.c.l.b16 %v1791
  %v1927 = vunpack.c.l.b16 %v1792
  %v1928 = vunpack.c.l.b16 %v1793
  %v1929 = vunpack.c.l.b16 %v1794
  %v1930 = vunpack.c.l.b16 %v1795
  %v1931 = vunpack.c.l.b16 %v1796
  %v1932 = vunpack.c.l.b16 %v1797
  %v1933 = vunpack.c.l.b16 %v1798
  %v1934 = vunpack.c.l.b16 %v1799
  %v1935 = vunpack.c.l.b16 %v1800
  %v1936 = vunpack.c.l.b16 %v1801
  %v1937 = vunpack.c.l.b16 %v1802
  %v1938 = vunpack.c.l.b16 %v1803
  %v1939 = vunpack.c.l.b16 %v1804
  %v1940 = vunpack.c.l.b16 %v1805
  %v1941 = vunpack.c.l.b16 %v1806
  %v1942 = vunpack.c.l.b16 %v1807
  %v1943 = vunpack.c.l.b16 %v1808
  %v1944 = vunpack.c.l.b16 %v1809
  %v1945 = vunpack.c.l.b16 %v1810
  %v1946 = vunpack.c.l.b16 %v1811
  %v1947 = vunpack.c.l.b16 %v1812
  %v1948 = vunpack.c.l.b16 %v1813
  %v1949 = vunpack.c.l.b16 %v1814
  %v1950 = vunpack.c.l.b16 %v1815
  %v1951 = vpack.c.b16 %v1888, %v1887
  %v1952 = vpack.c.b16 %v1890, %v1889
  %v1953 = vpack.c.b16 %v1892, %v1891
  %v1954 = vpack.c.b16 %v1894, %v1893
  %v1955 = vpack.c.b16 %v1896, %v1895
  %v1956 = vpack.c.b16 %v1898, %v1897
  %v1957 = vpack.c.b16 %v1900, %v1899
  %v1958 = vpack.c.b16 %v1902, %v1901
  %v1959 = vpack.c.b16 %v1904, %v1903
  %v1960 = vpack.c.b16 %v1906, %v1905
  %v1961 = vpack.c.b16 %v1908, %v1907
  %v1962 = vpack.c.b16 %v1910, %v1909
  %v1963 = vpack.c.b16 %v1912, %v1911
  %v1964 = vpack.c.b16 %v1914, %v1913
  %v1965 = vpack.c.b16 %v1916, %v1915
  %v1966 = vpack.c.b16 %v1918, %v1917
  %v1967 = vpack.c.b16 %v1920, %v1919
  %v1968 = vpack.c.b16 %v1922, %v1921
  %v1969 = vpack.c.b16 %v1924, %v1923
  %v1970 = vpack.c.b16 %v1926, %v1925
  %v1971 = vpack.c.b16 %v1928, %v1927
  %v1972 = vpack.c.b16 %v1930, %v1929
  %v1973 = vpack.c.b16 %v1932, %v1931
  %v1974 = vpack.c.b16 %v1934, %v1933
  %v1975 = vpack.c.b16 %v1936, %v1935
  %v1976 = vpack.c.b16 %v1938, %v1937
  %v1977 = vpack.c.b16 %v1940, %v1939
  %v1978 = vpack.c.b16 %v1942, %v1941
  %v1979 = vpack.c.b16 %v1944, %v1943
  %v1980 = vpack.c.b16 %v1946, %v1945
  %v1981 = vpack.c.b16 %v1948, %v1947
  %v1982 = vpack.c.b16 %v1950, %v1949
  %2015 = vmatprep.subr.bf16.mxu0 0
  %2016 = vmatpush1.bf16.msra.mxu0 %v1951
  %2017 = vmatprep.subr.bf16.mxu0 0
  %2018 = vmatpush1.bf16.msra.mxu0 %v1952
  %2019 = vmatprep.subr.bf16.mxu0 0
  %2020 = vmatpush1.bf16.msra.mxu0 %v1953
  %2021 = vmatprep.subr.bf16.mxu0 0
  %2022 = vmatpush1.bf16.msra.mxu0 %v1954
  %2023 = vmatprep.subr.bf16.mxu0 0
  %2024 = vmatpush1.bf16.msra.mxu0 %v1955
  %2025 = vmatprep.subr.bf16.mxu0 0
  %2026 = vmatpush1.bf16.msra.mxu0 %v1956
  %2027 = vmatprep.subr.bf16.mxu0 0
  %2028 = vmatpush1.bf16.msra.mxu0 %v1957
  %2029 = vmatprep.subr.bf16.mxu0 0
  %2030 = vmatpush1.bf16.msra.mxu0 %v1958
  %2031 = vmatprep.subr.bf16.mxu0 0
  %2032 = vmatpush1.bf16.msra.mxu0 %v1959
  %2033 = vmatprep.subr.bf16.mxu0 0
  %2034 = vmatpush1.bf16.msra.mxu0 %v1960
  %2035 = vmatprep.subr.bf16.mxu0 0
  %2036 = vmatpush1.bf16.msra.mxu0 %v1961
  %2037 = vmatprep.subr.bf16.mxu0 0
  %2038 = vmatpush1.bf16.msra.mxu0 %v1962
  %2039 = vmatprep.subr.bf16.mxu0 0
  %2040 = vmatpush1.bf16.msra.mxu0 %v1963
  %2041 = vmatprep.subr.bf16.mxu0 0
  %2042 = vmatpush1.bf16.msra.mxu0 %v1964
  %2043 = vmatprep.subr.bf16.mxu0 0
  %2044 = vmatpush1.bf16.msra.mxu0 %v1965
  %2045 = vmatprep.subr.bf16.mxu0 0
  %2046 = vmatpush1.bf16.msra.mxu0 %v1966
  %2047 = vmatprep.mubr.bf16.mxu0 %v1749
  %2048 = vmatmul.mubr.bf16.gmra.mrb[0].mxu0 %v1748
  %v2049 = vpop.f32.mrb[0].mxu0
  %v2050 = vadd.f32 %v1821, %v2049
  %v2051 = vpop.f32.mrb[0].mxu0
  %v2052 = vpop.f32.mrb[0].mxu0
  %v2053 = vpop.f32.mrb[0].mxu0
  %2054 = vdwg.mxu0
  %2055 = vmatprep.subr.bf16.mxu0 0
  %2056 = vmatpush1.bf16.msra.mxu0 %v1967
  %2057 = vmatprep.subr.bf16.mxu0 0
  %2058 = vmatpush1.bf16.msra.mxu0 %v1968
  %2059 = vmatprep.subr.bf16.mxu0 0
  %2060 = vmatpush1.bf16.msra.mxu0 %v1969
  %2061 = vmatprep.subr.bf16.mxu0 0
  %2062 = vmatpush1.bf16.msra.mxu0 %v1970
  %2063 = vmatprep.subr.bf16.mxu0 0
  %2064 = vmatpush1.bf16.msra.mxu0 %v1971
  %2065 = vmatprep.subr.bf16.mxu0 0
  %2066 = vmatpush1.bf16.msra.mxu0 %v1972
  %2067 = vmatprep.subr.bf16.mxu0 0
  %2068 = vmatpush1.bf16.msra.mxu0 %v1973
  %2069 = vmatprep.subr.bf16.mxu0 0
  %2070 = vmatpush1.bf16.msra.mxu0 %v1974
  %2071 = vmatprep.subr.bf16.mxu0 0
  %2072 = vmatpush1.bf16.msra.mxu0 %v1975
  %2073 = vmatprep.subr.bf16.mxu0 0
  %2074 = vmatpush1.bf16.msra.mxu0 %v1976
  %2075 = vmatprep.subr.bf16.mxu0 0
  %2076 = vmatpush1.bf16.msra.mxu0 %v1977
  %2077 = vmatprep.subr.bf16.mxu0 0
  %2078 = vmatpush1.bf16.msra.mxu0 %v1978
  %2079 = vmatprep.subr.bf16.mxu0 0
  %2080 = vmatpush1.bf16.msra.mxu0 %v1979
  %2081 = vmatprep.subr.bf16.mxu0 0
  %2082 = vmatpush1.bf16.msra.mxu0 %v1980
  %2083 = vmatprep.subr.bf16.mxu0 0
  %2084 = vmatpush1.bf16.msra.mxu0 %v1981
  %2085 = vmatprep.subr.bf16.mxu0 0
  %2086 = vmatpush1.bf16.msra.mxu0 %v1982
  %2087 = vmatprep.mubr.bf16.mxu0 %v1751
  %2088 = vmatmul.mubr.bf16.gmra.mrb[0].mxu0 %v1750
  %v2089 = vpop.f32.mrb[0].mxu0
  %v2090 = vadd.f32 %v2050, %v2089
  %v2091 = vpop.f32.mrb[0].mxu0
  %v2092 = vpop.f32.mrb[0].mxu0
  %v2093 = vpop.f32.mrb[0].mxu0
  %2094 = vdwg.mxu0
  %2095 = vst [vmem:[%s5] sm:$0xff] %v2090
  // Predicated region
  $region22: #{simple_nn_forward.1} parent=0 // pred_check
    _
  $region23: #{simple_nn_forward.1} parent=0 // pred_check_branch
    %2097 = sbr.rel (0) target = $region25
  $region24: #{simple_nn_forward.1} parent=0 // pred_region
    _
  $region25: #{simple_nn_forward.1} parent=0 // pred_fallthru
    _
  // Predicated region
  $region26: #{simple_nn_forward.1} parent=0 // pred_check
    _
  $region27: #{simple_nn_forward.1} parent=0 // pred_check_branch
    %2099 = sbr.rel (0) target = $region29
  $region28: #{simple_nn_forward.1} parent=0 // pred_region
    _
  $region29: #{simple_nn_forward.1} parent=0 // pred_fallthru
    _

</llo_original>
